<compile_context>
chip_gen: v6e
topology: v6e:2x2x1
jax: 0.10.0
libtpu: 0.0.40
codegen_flags: <defaults>
</compile_context>

<pallas_src>
import functools
import math

import jax
import jax.numpy as jnp
from jax.experimental import pallas as pl
from jax.experimental.pallas import tpu as pltpu


# ----------------------------------------------------------------------------
# Fused kernel: all RNN layers + FC in one grid-less pallas_call.
# ----------------------------------------------------------------------------
def _decoder_kernel(x_ref, wih_ref, whh_ref, b_ref, wfc_ref, bfc_ref, o_ref,
                    *, seq_len, batch, hidden, num_layers):
    # x_ref: (S*B, H) time-major flattened input (already float32)
    act = x_ref[...]  # (S*B, H)

    for l in range(num_layers):  # static, small
        # Hoisted input projection for ALL timesteps: one (S*B,H)@(H,H) matmul
        xproj = (
            jnp.dot(act, wih_ref[l], preferred_element_type=jnp.float32)
            + b_ref[l]  # (1, H) broadcasts
        )  # (S*B, H)
        whh = whh_ref[l]  # (H, H)

        h = jnp.zeros((batch, hidden), jnp.float32)
        outs = []
        for t in range(seq_len):  # static, fully unrolled recurrence
            h = jnp.tanh(
                xproj[t * batch:(t + 1) * batch, :]
                + jnp.dot(h, whh, preferred_element_type=jnp.float32)
            )
            outs.append(h)
        act = jnp.concatenate(outs, axis=0)  # (S*B, H)

    # FC epilogue: lane-dense (Z padded to 128) output, single MXU push.
    o_ref[...] = (
        jnp.dot(act, wfc_ref[...], preferred_element_type=jnp.float32)
        + bfc_ref[...]
    ).astype(o_ref.dtype)


# ----------------------------------------------------------------------------
# Full Decoder forward (single fused pallas_call)
# ----------------------------------------------------------------------------
@jax.jit
def decoder_forward(x_enc, params):
    S, B, H = x_enc.shape
    L = len(params["rnn"])
    Z = params["fc_w"].shape[0]
    ZP = max(128, ((Z + 127) // 128) * 128)  # lane-dense output width

    # Stack per-layer weights (pre-transposed) so the kernel indexes layer l
    # with a static leading-dim index.  NOTE: assumes input_size == hidden_dim
    # (true for this module: nn.RNN(input_size=hidden_dim, hidden_size=hidden_dim)).
    wih = jnp.stack([w_ih.T for (w_ih, _, _, _) in params["rnn"]])            # (L, H, H)
    whh = jnp.stack([w_hh.T for (_, w_hh, _, _) in params["rnn"]])            # (L, H, H)
    bias = jnp.stack([(b_ih + b_hh).reshape(1, H)
                      for (_, _, b_ih, b_hh) in params["rnn"]])               # (L, 1, H)

    wfc = jnp.zeros((H, ZP), jnp.float32).at[:, :Z].set(params["fc_w"].T)     # (H, ZP)
    bfc = jnp.zeros((1, ZP), jnp.float32).at[:, :Z].set(params["fc_b"])       # (1, ZP)

    x2d = x_enc.reshape(S * B, H).astype(jnp.float32)                         # (S*B, H)

    kernel = functools.partial(
        _decoder_kernel, seq_len=S, batch=B, hidden=H, num_layers=L
    )
    vmem = pl.BlockSpec(memory_space=pltpu.MemorySpace.VMEM)
    out = pl.pallas_call(
        kernel,
        out_shape=jax.ShapeDtypeStruct((S * B, ZP), jnp.float32),
        in_specs=[vmem] * 6,
        out_specs=vmem,
    )(x2d, wih, whh, bias, wfc, bfc)

    return out[:, :Z].reshape(S, B, Z)


# ----------------------------------------------------------------------------
# Pure-JAX reference (mirrors PyTorch nn.RNN + nn.Linear exactly)
# ----------------------------------------------------------------------------
def decoder_reference(x_enc, params):
    h_seq = x_enc
    for (w_ih, w_hh, b_ih, b_hh) in params["rnn"]:
        S, B, _ = h_seq.shape

        def step(h_prev, x_t):
            h_new = jnp.tanh(x_t @ w_ih.T + b_ih + h_prev @ w_hh.T + b_hh)
            return h_new, h_new

        _, h_seq = jax.lax.scan(step, jnp.zeros((B, w_hh.shape[0])), h_seq)
    return h_seq @ params["fc_w"].T + params["fc_b"]


# ----------------------------------------------------------------------------
# Deterministic parameter init (PyTorch default: U(-1/sqrt(H), 1/sqrt(H)))
# ----------------------------------------------------------------------------
def init_params(key, hidden_dim, z_dim, num_layers):
    params = {"rnn": []}
    bound = 1.0 / math.sqrt(hidden_dim)
    for _ in range(num_layers):
        key, k1, k2, k3, k4 = jax.random.split(key, 5)
        w_ih = jax.random.uniform(k1, (hidden_dim, hidden_dim), jnp.float32, -bound, bound)
        w_hh = jax.random.uniform(k2, (hidden_dim, hidden_dim), jnp.float32, -bound, bound)
        b_ih = jax.random.uniform(k3, (hidden_dim,), jnp.float32, -bound, bound)
        b_hh = jax.random.uniform(k4, (hidden_dim,), jnp.float32, -bound, bound)
        params["rnn"].append((w_ih, w_hh, b_ih, b_hh))
    key, k5, k6 = jax.random.split(key, 3)
    fcb = 1.0 / math.sqrt(hidden_dim)
    params["fc_w"] = jax.random.uniform(k5, (z_dim, hidden_dim), jnp.float32, -fcb, fcb)
    params["fc_b"] = jax.random.uniform(k6, (z_dim,), jnp.float32, -fcb, fcb)
    return params


if __name__ == "__main__":
    # args: hidden_dim=32, z_dim=16, num_layer=2 ; input (seq=8, batch=4, hidden=32)
    SEQ, BATCH, HIDDEN, Z_DIM, NUM_LAYERS = 8, 4, 32, 16, 2

    key = jax.random.PRNGKey(0)
    key, kx = jax.random.split(key)
    x_enc = jax.random.normal(kx, (SEQ, BATCH, HIDDEN), jnp.float32)

    params = init_params(key, HIDDEN, Z_DIM, NUM_LAYERS)

    out = decoder_forward(x_enc, params)
    out = jax.block_until_ready(out)

    ref = decoder_reference(x_enc, params)
    assert out.shape == (SEQ, BATCH, Z_DIM), out.shape
    assert jnp.allclose(out, ref, rtol=1e-2, atol=1e-2), (
        "mismatch vs reference: max abs err = "
        + str(float(jnp.max(jnp.abs(out - ref))))
    )

    print("KERNEL_OK")
</pallas_src>

<mosaic_0001>
module attributes {stable_mosaic.version = 11 : i64} {
  func.func @_decoder_kernel(%arg0: memref<32x32xf32, #tpu.memory_space<vmem>>, %arg1: memref<2x32x32xf32, #tpu.memory_space<vmem>>, %arg2: memref<2x32x32xf32, #tpu.memory_space<vmem>>, %arg3: memref<2x1x32xf32, #tpu.memory_space<vmem>>, %arg4: memref<32x128xf32, #tpu.memory_space<vmem>>, %arg5: memref<1x128xf32, #tpu.memory_space<vmem>>, %arg6: memref<32x128xf32, #tpu.memory_space<vmem>>) attributes {dimension_semantics = [], scalar_prefetch = 0 : i64, scratch_operands = 0 : i64, tpu.core_type = #tpu.core_type<tc>} {
    %c0 = arith.constant 0 : index
    %c0_0 = arith.constant 0 : index
    %0 = vector.load %arg0[%c0, %c0_0] : memref<32x32xf32, #tpu.memory_space<vmem>>, vector<32x32xf32>
    %c0_1 = arith.constant 0 : index
    %c0_2 = arith.constant 0 : index
    %c0_3 = arith.constant 0 : index
    %1 = vector.load %arg1[%c0_1, %c0_2, %c0_3] : memref<2x32x32xf32, #tpu.memory_space<vmem>>, vector<1x32x32xf32>
    %2 = vector.shape_cast %1 : vector<1x32x32xf32> to vector<32x32xf32>
    %cst = arith.constant dense<0.000000e+00> : vector<32x32xf32>
    %3 = tpu.matmul %0, %2, %cst {dimension_numbers = #tpu.dot_dimension_numbers<[1], [0], [0], [1], [0, 0, 1, 1], [], []>} : vector<32x32xf32>, vector<32x32xf32>, vector<32x32xf32> -> vector<32x32xf32>
    %c0_4 = arith.constant 0 : index
    %c0_5 = arith.constant 0 : index
    %c0_6 = arith.constant 0 : index
    %4 = vector.load %arg3[%c0_4, %c0_5, %c0_6] : memref<2x1x32xf32, #tpu.memory_space<vmem>>, vector<1x1x32xf32>
    %5 = vector.shape_cast %4 : vector<1x1x32xf32> to vector<1x32xf32>
    %6 = vector.broadcast %5 : vector<1x32xf32> to vector<32x32xf32>
    %7 = arith.addf %3, %6 : vector<32x32xf32>
    %c0_7 = arith.constant 0 : index
    %c0_8 = arith.constant 0 : index
    %c0_9 = arith.constant 0 : index
    %8 = vector.load %arg2[%c0_7, %c0_8, %c0_9] : memref<2x32x32xf32, #tpu.memory_space<vmem>>, vector<1x32x32xf32>
    %9 = vector.shape_cast %8 : vector<1x32x32xf32> to vector<32x32xf32>
    %cst_10 = arith.constant 0.000000e+00 : f32
    %10 = vector.broadcast %cst_10 : f32 to vector<4x32xf32>
    %11 = vector.extract_strided_slice %7 {offsets = [0, 0], sizes = [4, 32], strides = [1, 1]} : vector<32x32xf32> to vector<4x32xf32>
    %cst_11 = arith.constant dense<0.000000e+00> : vector<4x32xf32>
    %12 = tpu.matmul %10, %9, %cst_11 {dimension_numbers = #tpu.dot_dimension_numbers<[1], [0], [0], [1], [0, 0, 1, 1], [], []>} : vector<4x32xf32>, vector<32x32xf32>, vector<4x32xf32> -> vector<4x32xf32>
    %13 = arith.addf %11, %12 : vector<4x32xf32>
    %14 = math.tanh %13 : vector<4x32xf32>
    %15 = vector.extract_strided_slice %7 {offsets = [4, 0], sizes = [4, 32], strides = [1, 1]} : vector<32x32xf32> to vector<4x32xf32>
    %cst_12 = arith.constant dense<0.000000e+00> : vector<4x32xf32>
    %16 = tpu.matmul %14, %9, %cst_12 {dimension_numbers = #tpu.dot_dimension_numbers<[1], [0], [0], [1], [0, 0, 1, 1], [], []>} : vector<4x32xf32>, vector<32x32xf32>, vector<4x32xf32> -> vector<4x32xf32>
    %17 = arith.addf %15, %16 : vector<4x32xf32>
    %18 = math.tanh %17 : vector<4x32xf32>
    %19 = vector.extract_strided_slice %7 {offsets = [8, 0], sizes = [4, 32], strides = [1, 1]} : vector<32x32xf32> to vector<4x32xf32>
    %cst_13 = arith.constant dense<0.000000e+00> : vector<4x32xf32>
    %20 = tpu.matmul %18, %9, %cst_13 {dimension_numbers = #tpu.dot_dimension_numbers<[1], [0], [0], [1], [0, 0, 1, 1], [], []>} : vector<4x32xf32>, vector<32x32xf32>, vector<4x32xf32> -> vector<4x32xf32>
    %21 = arith.addf %19, %20 : vector<4x32xf32>
    %22 = math.tanh %21 : vector<4x32xf32>
    %23 = vector.extract_strided_slice %7 {offsets = [12, 0], sizes = [4, 32], strides = [1, 1]} : vector<32x32xf32> to vector<4x32xf32>
    %cst_14 = arith.constant dense<0.000000e+00> : vector<4x32xf32>
    %24 = tpu.matmul %22, %9, %cst_14 {dimension_numbers = #tpu.dot_dimension_numbers<[1], [0], [0], [1], [0, 0, 1, 1], [], []>} : vector<4x32xf32>, vector<32x32xf32>, vector<4x32xf32> -> vector<4x32xf32>
    %25 = arith.addf %23, %24 : vector<4x32xf32>
    %26 = math.tanh %25 : vector<4x32xf32>
    %27 = vector.extract_strided_slice %7 {offsets = [16, 0], sizes = [4, 32], strides = [1, 1]} : vector<32x32xf32> to vector<4x32xf32>
    %cst_15 = arith.constant dense<0.000000e+00> : vector<4x32xf32>
    %28 = tpu.matmul %26, %9, %cst_15 {dimension_numbers = #tpu.dot_dimension_numbers<[1], [0], [0], [1], [0, 0, 1, 1], [], []>} : vector<4x32xf32>, vector<32x32xf32>, vector<4x32xf32> -> vector<4x32xf32>
    %29 = arith.addf %27, %28 : vector<4x32xf32>
    %30 = math.tanh %29 : vector<4x32xf32>
    %31 = vector.extract_strided_slice %7 {offsets = [20, 0], sizes = [4, 32], strides = [1, 1]} : vector<32x32xf32> to vector<4x32xf32>
    %cst_16 = arith.constant dense<0.000000e+00> : vector<4x32xf32>
    %32 = tpu.matmul %30, %9, %cst_16 {dimension_numbers = #tpu.dot_dimension_numbers<[1], [0], [0], [1], [0, 0, 1, 1], [], []>} : vector<4x32xf32>, vector<32x32xf32>, vector<4x32xf32> -> vector<4x32xf32>
    %33 = arith.addf %31, %32 : vector<4x32xf32>
    %34 = math.tanh %33 : vector<4x32xf32>
    %35 = vector.extract_strided_slice %7 {offsets = [24, 0], sizes = [4, 32], strides = [1, 1]} : vector<32x32xf32> to vector<4x32xf32>
    %cst_17 = arith.constant dense<0.000000e+00> : vector<4x32xf32>
    %36 = tpu.matmul %34, %9, %cst_17 {dimension_numbers = #tpu.dot_dimension_numbers<[1], [0], [0], [1], [0, 0, 1, 1], [], []>} : vector<4x32xf32>, vector<32x32xf32>, vector<4x32xf32> -> vector<4x32xf32>
    %37 = arith.addf %35, %36 : vector<4x32xf32>
    %38 = math.tanh %37 : vector<4x32xf32>
    %39 = vector.extract_strided_slice %7 {offsets = [28, 0], sizes = [4, 32], strides = [1, 1]} : vector<32x32xf32> to vector<4x32xf32>
    %cst_18 = arith.constant dense<0.000000e+00> : vector<4x32xf32>
    %40 = tpu.matmul %38, %9, %cst_18 {dimension_numbers = #tpu.dot_dimension_numbers<[1], [0], [0], [1], [0, 0, 1, 1], [], []>} : vector<4x32xf32>, vector<32x32xf32>, vector<4x32xf32> -> vector<4x32xf32>
    %41 = arith.addf %39, %40 : vector<4x32xf32>
    %42 = math.tanh %41 : vector<4x32xf32>
    %43 = tpu.concatenate %14, %18, %22, %26, %30, %34, %38, %42 in 0 : vector<4x32xf32>, vector<4x32xf32>, vector<4x32xf32>, vector<4x32xf32>, vector<4x32xf32>, vector<4x32xf32>, vector<4x32xf32>, vector<4x32xf32> -> vector<32x32xf32>
    %c1 = arith.constant 1 : index
    %c0_19 = arith.constant 0 : index
    %c0_20 = arith.constant 0 : index
    %44 = vector.load %arg1[%c1, %c0_19, %c0_20] : memref<2x32x32xf32, #tpu.memory_space<vmem>>, vector<1x32x32xf32>
    %45 = vector.shape_cast %44 : vector<1x32x32xf32> to vector<32x32xf32>
    %cst_21 = arith.constant dense<0.000000e+00> : vector<32x32xf32>
    %46 = tpu.matmul %43, %45, %cst_21 {dimension_numbers = #tpu.dot_dimension_numbers<[1], [0], [0], [1], [0, 0, 1, 1], [], []>} : vector<32x32xf32>, vector<32x32xf32>, vector<32x32xf32> -> vector<32x32xf32>
    %c1_22 = arith.constant 1 : index
    %c0_23 = arith.constant 0 : index
    %c0_24 = arith.constant 0 : index
    %47 = vector.load %arg3[%c1_22, %c0_23, %c0_24] : memref<2x1x32xf32, #tpu.memory_space<vmem>>, vector<1x1x32xf32>
    %48 = vector.shape_cast %47 : vector<1x1x32xf32> to vector<1x32xf32>
    %49 = vector.broadcast %48 : vector<1x32xf32> to vector<32x32xf32>
    %50 = arith.addf %46, %49 : vector<32x32xf32>
    %c1_25 = arith.constant 1 : index
    %c0_26 = arith.constant 0 : index
    %c0_27 = arith.constant 0 : index
    %51 = vector.load %arg2[%c1_25, %c0_26, %c0_27] : memref<2x32x32xf32, #tpu.memory_space<vmem>>, vector<1x32x32xf32>
    %52 = vector.shape_cast %51 : vector<1x32x32xf32> to vector<32x32xf32>
    %cst_28 = arith.constant 0.000000e+00 : f32
    %53 = vector.broadcast %cst_28 : f32 to vector<4x32xf32>
    %54 = vector.extract_strided_slice %50 {offsets = [0, 0], sizes = [4, 32], strides = [1, 1]} : vector<32x32xf32> to vector<4x32xf32>
    %cst_29 = arith.constant dense<0.000000e+00> : vector<4x32xf32>
    %55 = tpu.matmul %53, %52, %cst_29 {dimension_numbers = #tpu.dot_dimension_numbers<[1], [0], [0], [1], [0, 0, 1, 1], [], []>} : vector<4x32xf32>, vector<32x32xf32>, vector<4x32xf32> -> vector<4x32xf32>
    %56 = arith.addf %54, %55 : vector<4x32xf32>
    %57 = math.tanh %56 : vector<4x32xf32>
    %58 = vector.extract_strided_slice %50 {offsets = [4, 0], sizes = [4, 32], strides = [1, 1]} : vector<32x32xf32> to vector<4x32xf32>
    %cst_30 = arith.constant dense<0.000000e+00> : vector<4x32xf32>
    %59 = tpu.matmul %57, %52, %cst_30 {dimension_numbers = #tpu.dot_dimension_numbers<[1], [0], [0], [1], [0, 0, 1, 1], [], []>} : vector<4x32xf32>, vector<32x32xf32>, vector<4x32xf32> -> vector<4x32xf32>
    %60 = arith.addf %58, %59 : vector<4x32xf32>
    %61 = math.tanh %60 : vector<4x32xf32>
    %62 = vector.extract_strided_slice %50 {offsets = [8, 0], sizes = [4, 32], strides = [1, 1]} : vector<32x32xf32> to vector<4x32xf32>
    %cst_31 = arith.constant dense<0.000000e+00> : vector<4x32xf32>
    %63 = tpu.matmul %61, %52, %cst_31 {dimension_numbers = #tpu.dot_dimension_numbers<[1], [0], [0], [1], [0, 0, 1, 1], [], []>} : vector<4x32xf32>, vector<32x32xf32>, vector<4x32xf32> -> vector<4x32xf32>
    %64 = arith.addf %62, %63 : vector<4x32xf32>
    %65 = math.tanh %64 : vector<4x32xf32>
    %66 = vector.extract_strided_slice %50 {offsets = [12, 0], sizes = [4, 32], strides = [1, 1]} : vector<32x32xf32> to vector<4x32xf32>
    %cst_32 = arith.constant dense<0.000000e+00> : vector<4x32xf32>
    %67 = tpu.matmul %65, %52, %cst_32 {dimension_numbers = #tpu.dot_dimension_numbers<[1], [0], [0], [1], [0, 0, 1, 1], [], []>} : vector<4x32xf32>, vector<32x32xf32>, vector<4x32xf32> -> vector<4x32xf32>
    %68 = arith.addf %66, %67 : vector<4x32xf32>
    %69 = math.tanh %68 : vector<4x32xf32>
    %70 = vector.extract_strided_slice %50 {offsets = [16, 0], sizes = [4, 32], strides = [1, 1]} : vector<32x32xf32> to vector<4x32xf32>
    %cst_33 = arith.constant dense<0.000000e+00> : vector<4x32xf32>
    %71 = tpu.matmul %69, %52, %cst_33 {dimension_numbers = #tpu.dot_dimension_numbers<[1], [0], [0], [1], [0, 0, 1, 1], [], []>} : vector<4x32xf32>, vector<32x32xf32>, vector<4x32xf32> -> vector<4x32xf32>
    %72 = arith.addf %70, %71 : vector<4x32xf32>
    %73 = math.tanh %72 : vector<4x32xf32>
    %74 = vector.extract_strided_slice %50 {offsets = [20, 0], sizes = [4, 32], strides = [1, 1]} : vector<32x32xf32> to vector<4x32xf32>
    %cst_34 = arith.constant dense<0.000000e+00> : vector<4x32xf32>
    %75 = tpu.matmul %73, %52, %cst_34 {dimension_numbers = #tpu.dot_dimension_numbers<[1], [0], [0], [1], [0, 0, 1, 1], [], []>} : vector<4x32xf32>, vector<32x32xf32>, vector<4x32xf32> -> vector<4x32xf32>
    %76 = arith.addf %74, %75 : vector<4x32xf32>
    %77 = math.tanh %76 : vector<4x32xf32>
    %78 = vector.extract_strided_slice %50 {offsets = [24, 0], sizes = [4, 32], strides = [1, 1]} : vector<32x32xf32> to vector<4x32xf32>
    %cst_35 = arith.constant dense<0.000000e+00> : vector<4x32xf32>
    %79 = tpu.matmul %77, %52, %cst_35 {dimension_numbers = #tpu.dot_dimension_numbers<[1], [0], [0], [1], [0, 0, 1, 1], [], []>} : vector<4x32xf32>, vector<32x32xf32>, vector<4x32xf32> -> vector<4x32xf32>
    %80 = arith.addf %78, %79 : vector<4x32xf32>
    %81 = math.tanh %80 : vector<4x32xf32>
    %82 = vector.extract_strided_slice %50 {offsets = [28, 0], sizes = [4, 32], strides = [1, 1]} : vector<32x32xf32> to vector<4x32xf32>
    %cst_36 = arith.constant dense<0.000000e+00> : vector<4x32xf32>
    %83 = tpu.matmul %81, %52, %cst_36 {dimension_numbers = #tpu.dot_dimension_numbers<[1], [0], [0], [1], [0, 0, 1, 1], [], []>} : vector<4x32xf32>, vector<32x32xf32>, vector<4x32xf32> -> vector<4x32xf32>
    %84 = arith.addf %82, %83 : vector<4x32xf32>
    %85 = math.tanh %84 : vector<4x32xf32>
    %86 = tpu.concatenate %57, %61, %65, %69, %73, %77, %81, %85 in 0 : vector<4x32xf32>, vector<4x32xf32>, vector<4x32xf32>, vector<4x32xf32>, vector<4x32xf32>, vector<4x32xf32>, vector<4x32xf32>, vector<4x32xf32> -> vector<32x32xf32>
    %c0_37 = arith.constant 0 : index
    %c0_38 = arith.constant 0 : index
    %87 = vector.load %arg4[%c0_37, %c0_38] : memref<32x128xf32, #tpu.memory_space<vmem>>, vector<32x128xf32>
    %cst_39 = arith.constant dense<0.000000e+00> : vector<32x128xf32>
    %88 = tpu.matmul %86, %87, %cst_39 {dimension_numbers = #tpu.dot_dimension_numbers<[1], [0], [0], [1], [0, 0, 1, 1], [], []>} : vector<32x32xf32>, vector<32x128xf32>, vector<32x128xf32> -> vector<32x128xf32>
    %c0_40 = arith.constant 0 : index
    %c0_41 = arith.constant 0 : index
    %89 = vector.load %arg5[%c0_40, %c0_41] : memref<1x128xf32, #tpu.memory_space<vmem>>, vector<1x128xf32>
    %90 = vector.broadcast %89 : vector<1x128xf32> to vector<32x128xf32>
    %91 = arith.addf %88, %90 : vector<32x128xf32>
    %c0_42 = arith.constant 0 : index
    %c0_43 = arith.constant 0 : index
    %92 = vector.load %arg6[%c0_42, %c0_43] : memref<32x128xf32, #tpu.memory_space<vmem>>, vector<32x128xf32>
    tpu.vector_store %arg6[%c0_42, %c0_43], %91 {strides = array<i32>} : memref<32x128xf32, #tpu.memory_space<vmem>>, vector<32x128xf32>,
    return
  }
}

</mosaic_0001>

<llo_original>
// kernel: decoder_forward.1
$region0: #{decoder_forward.1}
  #allocation0 [shape = 'u32[]', space=smem, size = 0x4, offset = 0x4, fixed_abs, tag = 'smem constant byte address 0x4 - core index']
  #allocation1 [shape = 'u32[144,128]{1,0:T(1,128)}', space=vmem, size = 0x12000, scoped, tag = 'internal scratch']
  %s0 = inlined_call_operand.vmem [shape: f32[32,32], index: 0, kind: input, shape index: {}]
  %s1 = inlined_call_operand.vmem [shape: f32[2,32,32], index: 1, kind: input, shape index: {}]
  %s2 = inlined_call_operand.vmem [shape: f32[2,32,32], index: 2, kind: input, shape index: {}]
  %s3 = inlined_call_operand.vmem [shape: f32[2,1,32], index: 3, kind: input, shape index: {}]
  %s4 = inlined_call_operand.vmem [shape: f32[32,128], index: 4, kind: input, shape index: {}]
  %s5 = inlined_call_operand.vmem [shape: f32[1,128], index: 5, kind: input, shape index: {}]
  %s6 = inlined_call_operand.hbm [shape: f32[32,128], index: 6, kind: output, shape index: {}]
  %s7 = sld [smem:[#allocation0]]
  $region34: #{decoder_forward.1} parent=0
    _
  %s9 = ssub.s32 1, %s7
  %s10 = scalar_select 0, %s9, %s7
  $region1: #{decoder_forward.1} parent=0
    #allocation2 [shape = 'u8[16384]{0}', space=vmem, size = 0x4000, scoped, tag = 'output window, operand 0, single buffered']
    #allocation3 [shape = 's32[1]{0}', space=sflag, size = 0x4, scoped, tag = 'scoped memory for decoder_forward.1']
    %11 = vsyncpa [#allocation3], 0
    // Predicated region
    $region2: #{decoder_forward.1} parent=1 // pred_check
      _
    $region3: #{decoder_forward.1} parent=1 // pred_check_branch
      %13 = sbr.rel (0) target = $region5
    $region4: #{decoder_forward.1} parent=1 // pred_region
      _
    $region5: #{decoder_forward.1} parent=1 // pred_fallthru
      _
    // Predicated region
    $region6: #{decoder_forward.1} parent=1 // pred_check
      _
    $region7: #{decoder_forward.1} parent=1 // pred_check_branch
      %15 = sbr.rel (0) target = $region9
    $region8: #{decoder_forward.1} parent=1 // pred_region
      _
    $region9: #{decoder_forward.1} parent=1 // pred_fallthru
      _
    // Predicated region
    $region10: #{decoder_forward.1} parent=1 // pred_check
      _
    $region11: #{decoder_forward.1} parent=1 // pred_check_branch
      %17 = sbr.rel (0) target = $region13
    $region12: #{decoder_forward.1} parent=1 // pred_region
      _
    $region13: #{decoder_forward.1} parent=1 // pred_fallthru
      _
    // Predicated region
    $region14: #{decoder_forward.1} parent=1 // pred_check
      _
    $region15: #{decoder_forward.1} parent=1 // pred_check_branch
      %19 = sbr.rel (0) target = $region17
    $region16: #{decoder_forward.1} parent=1 // pred_region
      _
    $region17: #{decoder_forward.1} parent=1 // pred_fallthru
      _
    // Predicated region
    $region18: #{decoder_forward.1} parent=1 // pred_check
      _
    $region19: #{decoder_forward.1} parent=1 // pred_check_branch
      %21 = sbr.rel (0) target = $region21
    $region20: #{decoder_forward.1} parent=1 // pred_region
      _
    $region21: #{decoder_forward.1} parent=1 // pred_fallthru
      _
    // Predicated region
    $region22: #{decoder_forward.1} parent=1 // pred_check
      _
    $region23: #{decoder_forward.1} parent=1 // pred_check_branch
      %23 = sbr.rel (0) target = $region25
    $region24: #{decoder_forward.1} parent=1 // pred_region
      _
    $region25: #{decoder_forward.1} parent=1 // pred_fallthru
      _
    %v24 = vld [vmem:[%s0] sm:$0xff]
    %v25 = vld [vmem:[%s0 + $0x8] sm:$0xff]
    %v26 = vld [vmem:[%s0 + $0x10] sm:$0xff]
    %v27 = vld [vmem:[%s0 + $0x18] sm:$0xff]
    %v28 = vld [vmem:[%s1] sm:$0xff]
    %v29 = vld [vmem:[%s1 + $0x8] sm:$0xff]
    %v30 = vld [vmem:[%s1 + $0x10] sm:$0xff]
    %v31 = vld [vmem:[%s1 + $0x18] sm:$0xff]
    %v32 = vld [vmem:[%s3] sm:$0x1]
    %v34 = vlaneseq
    %v35 = vshrl.u32 %v34, 7
    %v36 = vsub.s32 0, %v35
    %v37 = vrot.slane %v32, %v36
    %vm39 = vcmask 261120
    %v41 = vsel %vm39, %v24, 0
    %v44 = vsel %vm39, %v25, 0
    %v47 = vsel %vm39, %v26, 0
    %v50 = vsel %vm39, %v27, 0
    %52 = vmatprep.subr.mxu0 0.0
    %53 = vmatpush1.msra.mxu0 0.0
    %54 = vmatprep.subr.mxu0 0.0
    %55 = vmatpush1.msra.mxu0 0.0
    %56 = vmatprep.subr.mxu0 0.0
    %57 = vmatpush1.msra.mxu0 0.0
    %58 = vmatprep.subr.mxu0 0.0
    %59 = vmatpush1.msra.mxu0 0.0
    %60 = vmatprep.subr.mxu0 0.0
    %61 = vmatpush1.msra.mxu0 0.0
    %62 = vmatprep.subr.mxu0 0.0
    %63 = vmatpush1.msra.mxu0 0.0
    %64 = vmatprep.subr.mxu0 0.0
    %65 = vmatpush1.msra.mxu0 0.0
    %66 = vmatprep.subr.mxu0 0.0
    %67 = vmatpush1.msra.mxu0 0.0
    %68 = vmatprep.subr.mxu0 0.0
    %69 = vmatpush1.msra.mxu0 0.0
    %70 = vmatprep.subr.mxu0 0.0
    %71 = vmatpush1.msra.mxu0 0.0
    %72 = vmatprep.subr.mxu0 0.0
    %73 = vmatpush1.msra.mxu0 0.0
    %74 = vmatprep.subr.mxu0 0.0
    %75 = vmatpush1.msra.mxu0 0.0
    %76 = vmatprep.subr.mxu0 0.0
    %77 = vmatpush1.msra.mxu0 %v31
    %78 = vmatprep.subr.mxu0 0.0
    %79 = vmatpush1.msra.mxu0 %v30
    %80 = vmatprep.subr.mxu0 0.0
    %81 = vmatpush1.msra.mxu0 %v29
    %82 = vmatprep.subr.mxu0 0.0
    %83 = vmatpush1.msra.mxu0 %v28
    %84 = vmatprep.subr.mxu0 0.0
    %85 = vmatpush2.msra.mxu0 0.0
    %86 = vmatprep.subr.mxu0 0.0
    %87 = vmatpush2.msra.mxu0 0.0
    %88 = vmatprep.subr.mxu0 0.0
    %89 = vmatpush2.msra.mxu0 0.0
    %90 = vmatprep.subr.mxu0 0.0
    %91 = vmatpush2.msra.mxu0 0.0
    %92 = vmatprep.subr.mxu0 0.0
    %93 = vmatpush2.msra.mxu0 0.0
    %94 = vmatprep.subr.mxu0 0.0
    %95 = vmatpush2.msra.mxu0 0.0
    %96 = vmatprep.subr.mxu0 0.0
    %97 = vmatpush2.msra.mxu0 0.0
    %98 = vmatprep.subr.mxu0 0.0
    %99 = vmatpush2.msra.mxu0 0.0
    %100 = vmatprep.subr.mxu0 0.0
    %101 = vmatpush2.msra.mxu0 0.0
    %102 = vmatprep.subr.mxu0 0.0
    %103 = vmatpush2.msra.mxu0 0.0
    %104 = vmatprep.subr.mxu0 0.0
    %105 = vmatpush2.msra.mxu0 0.0
    %106 = vmatprep.subr.mxu0 0.0
    %107 = vmatpush2.msra.mxu0 0.0
    %108 = vmatprep.subr.mxu0 0.0
    %109 = vmatpush2.msra.mxu0 0.0
    %110 = vmatprep.subr.mxu0 0.0
    %111 = vmatpush2.msra.mxu0 0.0
    %112 = vmatprep.subr.mxu0 0.0
    %113 = vmatpush2.msra.mxu0 0.0
    %114 = vmatprep.subr.mxu0 0.0
    %115 = vmatpush2.msra.mxu0 0.0
    %116 = vmatprep.mubr.f32.mxu0 0.0
    %117 = vmatmul.mubr.f32.gmra.mxu0 %v41
    %v118 = vpop.f32.mrf.mxu0
    %v119 = vadd.f32 %v37, %v118
    %v120 = vpop.f32.mrf.mxu0
    %121 = vmatprep.mubr.f32.mxu0 0.0
    %122 = vmatmul.mubr.f32.gmra.mxu0 %v44
    %v123 = vpop.f32.mrf.mxu0
    %v124 = vadd.f32 %v37, %v123
    %v125 = vpop.f32.mrf.mxu0
    %126 = vmatprep.mubr.f32.mxu0 0.0
    %127 = vmatmul.mubr.f32.gmra.mxu0 %v47
    %v128 = vpop.f32.mrf.mxu0
    %v129 = vadd.f32 %v37, %v128
    %v130 = vpop.f32.mrf.mxu0
    %131 = vmatprep.mubr.f32.mxu0 0.0
    %132 = vmatmul.mubr.f32.gmra.mxu0 %v50
    %v133 = vpop.f32.mrf.mxu0
    %v134 = vadd.f32 %v37, %v133
    %v135 = vpop.f32.mrf.mxu0
    %136 = vdwg.mxu0
    %v137 = vld [vmem:[%s2] sm:$0xff]
    %v138 = vld [vmem:[%s2 + $0x8] sm:$0xff]
    %v139 = vld [vmem:[%s2 + $0x10] sm:$0xff]
    %v140 = vld [vmem:[%s2 + $0x18] sm:$0xff]
    %v142 = vsel %vm39, 0.0, 0
    %144 = vmatprep.subr.mxu0 0.0
    %145 = vmatpush1.msra.mxu0 0.0
    %146 = vmatprep.subr.mxu0 0.0
    %147 = vmatpush1.msra.mxu0 0.0
    %148 = vmatprep.subr.mxu0 0.0
    %149 = vmatpush1.msra.mxu0 0.0
    %150 = vmatprep.subr.mxu0 0.0
    %151 = vmatpush1.msra.mxu0 0.0
    %152 = vmatprep.subr.mxu0 0.0
    %153 = vmatpush1.msra.mxu0 0.0
    %154 = vmatprep.subr.mxu0 0.0
    %155 = vmatpush1.msra.mxu0 0.0
    %156 = vmatprep.subr.mxu0 0.0
    %157 = vmatpush1.msra.mxu0 0.0
    %158 = vmatprep.subr.mxu0 0.0
    %159 = vmatpush1.msra.mxu0 0.0
    %160 = vmatprep.subr.mxu0 0.0
    %161 = vmatpush1.msra.mxu0 0.0
    %162 = vmatprep.subr.mxu0 0.0
    %163 = vmatpush1.msra.mxu0 0.0
    %164 = vmatprep.subr.mxu0 0.0
    %165 = vmatpush1.msra.mxu0 0.0
    %166 = vmatprep.subr.mxu0 0.0
    %167 = vmatpush1.msra.mxu0 0.0
    %168 = vmatprep.subr.mxu0 0.0
    %169 = vmatpush1.msra.mxu0 %v140
    %170 = vmatprep.subr.mxu0 0.0
    %171 = vmatpush1.msra.mxu0 %v139
    %172 = vmatprep.subr.mxu0 0.0
    %173 = vmatpush1.msra.mxu0 %v138
    %174 = vmatprep.subr.mxu0 0.0
    %175 = vmatpush1.msra.mxu0 %v137
    %176 = vmatprep.subr.mxu0 0.0
    %177 = vmatpush2.msra.mxu0 0.0
    %178 = vmatprep.subr.mxu0 0.0
    %179 = vmatpush2.msra.mxu0 0.0
    %180 = vmatprep.subr.mxu0 0.0
    %181 = vmatpush2.msra.mxu0 0.0
    %182 = vmatprep.subr.mxu0 0.0
    %183 = vmatpush2.msra.mxu0 0.0
    %184 = vmatprep.subr.mxu0 0.0
    %185 = vmatpush2.msra.mxu0 0.0
    %186 = vmatprep.subr.mxu0 0.0
    %187 = vmatpush2.msra.mxu0 0.0
    %188 = vmatprep.subr.mxu0 0.0
    %189 = vmatpush2.msra.mxu0 0.0
    %190 = vmatprep.subr.mxu0 0.0
    %191 = vmatpush2.msra.mxu0 0.0
    %192 = vmatprep.subr.mxu0 0.0
    %193 = vmatpush2.msra.mxu0 0.0
    %194 = vmatprep.subr.mxu0 0.0
    %195 = vmatpush2.msra.mxu0 0.0
    %196 = vmatprep.subr.mxu0 0.0
    %197 = vmatpush2.msra.mxu0 0.0
    %198 = vmatprep.subr.mxu0 0.0
    %199 = vmatpush2.msra.mxu0 0.0
    %200 = vmatprep.subr.mxu0 0.0
    %201 = vmatpush2.msra.mxu0 0.0
    %202 = vmatprep.subr.mxu0 0.0
    %203 = vmatpush2.msra.mxu0 0.0
    %204 = vmatprep.subr.mxu0 0.0
    %205 = vmatpush2.msra.mxu0 0.0
    %206 = vmatprep.subr.mxu0 0.0
    %207 = vmatpush2.msra.mxu0 0.0
    %208 = vmatprep.mubr.f32.mxu0 0.0
    %209 = vmatmul.mubr.f32.gmra.mxu0 %v142
    %v210 = vpop.f32.mrf.mxu0
    %v211 = vadd.f32 0.0, %v210
    %v212 = vpop.f32.mrf.mxu0
    %213 = vdwg.mxu0
    %v214 = vadd.f32 %v119, %v211
    %v215 = vtanh.pop %v214
    %v217 = vsel %vm39, %v215, 0
    %219 = vmatprep.subr.mxu0 0.0
    %220 = vmatpush1.msra.mxu0 0.0
    %221 = vmatprep.subr.mxu0 0.0
    %222 = vmatpush1.msra.mxu0 0.0
    %223 = vmatprep.subr.mxu0 0.0
    %224 = vmatpush1.msra.mxu0 0.0
    %225 = vmatprep.subr.mxu0 0.0
    %226 = vmatpush1.msra.mxu0 0.0
    %227 = vmatprep.subr.mxu0 0.0
    %228 = vmatpush1.msra.mxu0 0.0
    %229 = vmatprep.subr.mxu0 0.0
    %230 = vmatpush1.msra.mxu0 0.0
    %231 = vmatprep.subr.mxu0 0.0
    %232 = vmatpush1.msra.mxu0 0.0
    %233 = vmatprep.subr.mxu0 0.0
    %234 = vmatpush1.msra.mxu0 0.0
    %235 = vmatprep.subr.mxu0 0.0
    %236 = vmatpush1.msra.mxu0 0.0
    %237 = vmatprep.subr.mxu0 0.0
    %238 = vmatpush1.msra.mxu0 0.0
    %239 = vmatprep.subr.mxu0 0.0
    %240 = vmatpush1.msra.mxu0 0.0
    %241 = vmatprep.subr.mxu0 0.0
    %242 = vmatpush1.msra.mxu0 0.0
    %243 = vmatprep.subr.mxu0 0.0
    %244 = vmatpush1.msra.mxu0 %v140
    %245 = vmatprep.subr.mxu0 0.0
    %246 = vmatpush1.msra.mxu0 %v139
    %247 = vmatprep.subr.mxu0 0.0
    %248 = vmatpush1.msra.mxu0 %v138
    %249 = vmatprep.subr.mxu0 0.0
    %250 = vmatpush1.msra.mxu0 %v137
    %251 = vmatprep.subr.mxu0 0.0
    %252 = vmatpush2.msra.mxu0 0.0
    %253 = vmatprep.subr.mxu0 0.0
    %254 = vmatpush2.msra.mxu0 0.0
    %255 = vmatprep.subr.mxu0 0.0
    %256 = vmatpush2.msra.mxu0 0.0
    %257 = vmatprep.subr.mxu0 0.0
    %258 = vmatpush2.msra.mxu0 0.0
    %259 = vmatprep.subr.mxu0 0.0
    %260 = vmatpush2.msra.mxu0 0.0
    %261 = vmatprep.subr.mxu0 0.0
    %262 = vmatpush2.msra.mxu0 0.0
    %263 = vmatprep.subr.mxu0 0.0
    %264 = vmatpush2.msra.mxu0 0.0
    %265 = vmatprep.subr.mxu0 0.0
    %266 = vmatpush2.msra.mxu0 0.0
    %267 = vmatprep.subr.mxu0 0.0
    %268 = vmatpush2.msra.mxu0 0.0
    %269 = vmatprep.subr.mxu0 0.0
    %270 = vmatpush2.msra.mxu0 0.0
    %271 = vmatprep.subr.mxu0 0.0
    %272 = vmatpush2.msra.mxu0 0.0
    %273 = vmatprep.subr.mxu0 0.0
    %274 = vmatpush2.msra.mxu0 0.0
    %275 = vmatprep.subr.mxu0 0.0
    %276 = vmatpush2.msra.mxu0 0.0
    %277 = vmatprep.subr.mxu0 0.0
    %278 = vmatpush2.msra.mxu0 0.0
    %279 = vmatprep.subr.mxu0 0.0
    %280 = vmatpush2.msra.mxu0 0.0
    %281 = vmatprep.subr.mxu0 0.0
    %282 = vmatpush2.msra.mxu0 0.0
    %283 = vmatprep.mubr.f32.mxu0 0.0
    %284 = vmatmul.mubr.f32.gmra.mxu0 %v217
    %v285 = vpop.f32.mrf.mxu0
    %v286 = vadd.f32 0.0, %v285
    %v287 = vpop.f32.mrf.mxu0
    %288 = vdwg.mxu0
    %v290 = vrot.slane %v286, 4
    %v292 = vadd.f32 %v119, %v290
    %v293 = vtanh.pop %v292
    %v295 = vrot.slane %v293, 4
    %v296 = vsel %vm39, %v295, 0
    %298 = vmatprep.subr.mxu0 0.0
    %299 = vmatpush1.msra.mxu0 0.0
    %300 = vmatprep.subr.mxu0 0.0
    %301 = vmatpush1.msra.mxu0 0.0
    %302 = vmatprep.subr.mxu0 0.0
    %303 = vmatpush1.msra.mxu0 0.0
    %304 = vmatprep.subr.mxu0 0.0
    %305 = vmatpush1.msra.mxu0 0.0
    %306 = vmatprep.subr.mxu0 0.0
    %307 = vmatpush1.msra.mxu0 0.0
    %308 = vmatprep.subr.mxu0 0.0
    %309 = vmatpush1.msra.mxu0 0.0
    %310 = vmatprep.subr.mxu0 0.0
    %311 = vmatpush1.msra.mxu0 0.0
    %312 = vmatprep.subr.mxu0 0.0
    %313 = vmatpush1.msra.mxu0 0.0
    %314 = vmatprep.subr.mxu0 0.0
    %315 = vmatpush1.msra.mxu0 0.0
    %316 = vmatprep.subr.mxu0 0.0
    %317 = vmatpush1.msra.mxu0 0.0
    %318 = vmatprep.subr.mxu0 0.0
    %319 = vmatpush1.msra.mxu0 0.0
    %320 = vmatprep.subr.mxu0 0.0
    %321 = vmatpush1.msra.mxu0 0.0
    %322 = vmatprep.subr.mxu0 0.0
    %323 = vmatpush1.msra.mxu0 %v140
    %324 = vmatprep.subr.mxu0 0.0
    %325 = vmatpush1.msra.mxu0 %v139
    %326 = vmatprep.subr.mxu0 0.0
    %327 = vmatpush1.msra.mxu0 %v138
    %328 = vmatprep.subr.mxu0 0.0
    %329 = vmatpush1.msra.mxu0 %v137
    %330 = vmatprep.subr.mxu0 0.0
    %331 = vmatpush2.msra.mxu0 0.0
    %332 = vmatprep.subr.mxu0 0.0
    %333 = vmatpush2.msra.mxu0 0.0
    %334 = vmatprep.subr.mxu0 0.0
    %335 = vmatpush2.msra.mxu0 0.0
    %336 = vmatprep.subr.mxu0 0.0
    %337 = vmatpush2.msra.mxu0 0.0
    %338 = vmatprep.subr.mxu0 0.0
    %339 = vmatpush2.msra.mxu0 0.0
    %340 = vmatprep.subr.mxu0 0.0
    %341 = vmatpush2.msra.mxu0 0.0
    %342 = vmatprep.subr.mxu0 0.0
    %343 = vmatpush2.msra.mxu0 0.0
    %344 = vmatprep.subr.mxu0 0.0
    %345 = vmatpush2.msra.mxu0 0.0
    %346 = vmatprep.subr.mxu0 0.0
    %347 = vmatpush2.msra.mxu0 0.0
    %348 = vmatprep.subr.mxu0 0.0
    %349 = vmatpush2.msra.mxu0 0.0
    %350 = vmatprep.subr.mxu0 0.0
    %351 = vmatpush2.msra.mxu0 0.0
    %352 = vmatprep.subr.mxu0 0.0
    %353 = vmatpush2.msra.mxu0 0.0
    %354 = vmatprep.subr.mxu0 0.0
    %355 = vmatpush2.msra.mxu0 0.0
    %356 = vmatprep.subr.mxu0 0.0
    %357 = vmatpush2.msra.mxu0 0.0
    %358 = vmatprep.subr.mxu0 0.0
    %359 = vmatpush2.msra.mxu0 0.0
    %360 = vmatprep.subr.mxu0 0.0
    %361 = vmatpush2.msra.mxu0 0.0
    %362 = vmatprep.mubr.f32.mxu0 0.0
    %363 = vmatmul.mubr.f32.gmra.mxu0 %v296
    %v364 = vpop.f32.mrf.mxu0
    %v365 = vadd.f32 0.0, %v364
    %v366 = vpop.f32.mrf.mxu0
    %367 = vdwg.mxu0
    %v368 = vadd.f32 %v124, %v365
    %v369 = vtanh.pop %v368
    %v371 = vsel %vm39, %v369, 0
    %373 = vmatprep.subr.mxu0 0.0
    %374 = vmatpush1.msra.mxu0 0.0
    %375 = vmatprep.subr.mxu0 0.0
    %376 = vmatpush1.msra.mxu0 0.0
    %377 = vmatprep.subr.mxu0 0.0
    %378 = vmatpush1.msra.mxu0 0.0
    %379 = vmatprep.subr.mxu0 0.0
    %380 = vmatpush1.msra.mxu0 0.0
    %381 = vmatprep.subr.mxu0 0.0
    %382 = vmatpush1.msra.mxu0 0.0
    %383 = vmatprep.subr.mxu0 0.0
    %384 = vmatpush1.msra.mxu0 0.0
    %385 = vmatprep.subr.mxu0 0.0
    %386 = vmatpush1.msra.mxu0 0.0
    %387 = vmatprep.subr.mxu0 0.0
    %388 = vmatpush1.msra.mxu0 0.0
    %389 = vmatprep.subr.mxu0 0.0
    %390 = vmatpush1.msra.mxu0 0.0
    %391 = vmatprep.subr.mxu0 0.0
    %392 = vmatpush1.msra.mxu0 0.0
    %393 = vmatprep.subr.mxu0 0.0
    %394 = vmatpush1.msra.mxu0 0.0
    %395 = vmatprep.subr.mxu0 0.0
    %396 = vmatpush1.msra.mxu0 0.0
    %397 = vmatprep.subr.mxu0 0.0
    %398 = vmatpush1.msra.mxu0 %v140
    %399 = vmatprep.subr.mxu0 0.0
    %400 = vmatpush1.msra.mxu0 %v139
    %401 = vmatprep.subr.mxu0 0.0
    %402 = vmatpush1.msra.mxu0 %v138
    %403 = vmatprep.subr.mxu0 0.0
    %404 = vmatpush1.msra.mxu0 %v137
    %405 = vmatprep.subr.mxu0 0.0
    %406 = vmatpush2.msra.mxu0 0.0
    %407 = vmatprep.subr.mxu0 0.0
    %408 = vmatpush2.msra.mxu0 0.0
    %409 = vmatprep.subr.mxu0 0.0
    %410 = vmatpush2.msra.mxu0 0.0
    %411 = vmatprep.subr.mxu0 0.0
    %412 = vmatpush2.msra.mxu0 0.0
    %413 = vmatprep.subr.mxu0 0.0
    %414 = vmatpush2.msra.mxu0 0.0
    %415 = vmatprep.subr.mxu0 0.0
    %416 = vmatpush2.msra.mxu0 0.0
    %417 = vmatprep.subr.mxu0 0.0
    %418 = vmatpush2.msra.mxu0 0.0
    %419 = vmatprep.subr.mxu0 0.0
    %420 = vmatpush2.msra.mxu0 0.0
    %421 = vmatprep.subr.mxu0 0.0
    %422 = vmatpush2.msra.mxu0 0.0
    %423 = vmatprep.subr.mxu0 0.0
    %424 = vmatpush2.msra.mxu0 0.0
    %425 = vmatprep.subr.mxu0 0.0
    %426 = vmatpush2.msra.mxu0 0.0
    %427 = vmatprep.subr.mxu0 0.0
    %428 = vmatpush2.msra.mxu0 0.0
    %429 = vmatprep.subr.mxu0 0.0
    %430 = vmatpush2.msra.mxu0 0.0
    %431 = vmatprep.subr.mxu0 0.0
    %432 = vmatpush2.msra.mxu0 0.0
    %433 = vmatprep.subr.mxu0 0.0
    %434 = vmatpush2.msra.mxu0 0.0
    %435 = vmatprep.subr.mxu0 0.0
    %436 = vmatpush2.msra.mxu0 0.0
    %437 = vmatprep.mubr.f32.mxu0 0.0
    %438 = vmatmul.mubr.f32.gmra.mxu0 %v371
    %v439 = vpop.f32.mrf.mxu0
    %v440 = vadd.f32 0.0, %v439
    %v441 = vpop.f32.mrf.mxu0
    %442 = vdwg.mxu0
    %v444 = vrot.slane %v440, 4
    %v446 = vadd.f32 %v124, %v444
    %v447 = vtanh.pop %v446
    %v449 = vrot.slane %v447, 4
    %v450 = vsel %vm39, %v449, 0
    %452 = vmatprep.subr.mxu0 0.0
    %453 = vmatpush1.msra.mxu0 0.0
    %454 = vmatprep.subr.mxu0 0.0
    %455 = vmatpush1.msra.mxu0 0.0
    %456 = vmatprep.subr.mxu0 0.0
    %457 = vmatpush1.msra.mxu0 0.0
    %458 = vmatprep.subr.mxu0 0.0
    %459 = vmatpush1.msra.mxu0 0.0
    %460 = vmatprep.subr.mxu0 0.0
    %461 = vmatpush1.msra.mxu0 0.0
    %462 = vmatprep.subr.mxu0 0.0
    %463 = vmatpush1.msra.mxu0 0.0
    %464 = vmatprep.subr.mxu0 0.0
    %465 = vmatpush1.msra.mxu0 0.0
    %466 = vmatprep.subr.mxu0 0.0
    %467 = vmatpush1.msra.mxu0 0.0
    %468 = vmatprep.subr.mxu0 0.0
    %469 = vmatpush1.msra.mxu0 0.0
    %470 = vmatprep.subr.mxu0 0.0
    %471 = vmatpush1.msra.mxu0 0.0
    %472 = vmatprep.subr.mxu0 0.0
    %473 = vmatpush1.msra.mxu0 0.0
    %474 = vmatprep.subr.mxu0 0.0
    %475 = vmatpush1.msra.mxu0 0.0
    %476 = vmatprep.subr.mxu0 0.0
    %477 = vmatpush1.msra.mxu0 %v140
    %478 = vmatprep.subr.mxu0 0.0
    %479 = vmatpush1.msra.mxu0 %v139
    %480 = vmatprep.subr.mxu0 0.0
    %481 = vmatpush1.msra.mxu0 %v138
    %482 = vmatprep.subr.mxu0 0.0
    %483 = vmatpush1.msra.mxu0 %v137
    %484 = vmatprep.subr.mxu0 0.0
    %485 = vmatpush2.msra.mxu0 0.0
    %486 = vmatprep.subr.mxu0 0.0
    %487 = vmatpush2.msra.mxu0 0.0
    %488 = vmatprep.subr.mxu0 0.0
    %489 = vmatpush2.msra.mxu0 0.0
    %490 = vmatprep.subr.mxu0 0.0
    %491 = vmatpush2.msra.mxu0 0.0
    %492 = vmatprep.subr.mxu0 0.0
    %493 = vmatpush2.msra.mxu0 0.0
    %494 = vmatprep.subr.mxu0 0.0
    %495 = vmatpush2.msra.mxu0 0.0
    %496 = vmatprep.subr.mxu0 0.0
    %497 = vmatpush2.msra.mxu0 0.0
    %498 = vmatprep.subr.mxu0 0.0
    %499 = vmatpush2.msra.mxu0 0.0
    %500 = vmatprep.subr.mxu0 0.0
    %501 = vmatpush2.msra.mxu0 0.0
    %502 = vmatprep.subr.mxu0 0.0
    %503 = vmatpush2.msra.mxu0 0.0
    %504 = vmatprep.subr.mxu0 0.0
    %505 = vmatpush2.msra.mxu0 0.0
    %506 = vmatprep.subr.mxu0 0.0
    %507 = vmatpush2.msra.mxu0 0.0
    %508 = vmatprep.subr.mxu0 0.0
    %509 = vmatpush2.msra.mxu0 0.0
    %510 = vmatprep.subr.mxu0 0.0
    %511 = vmatpush2.msra.mxu0 0.0
    %512 = vmatprep.subr.mxu0 0.0
    %513 = vmatpush2.msra.mxu0 0.0
    %514 = vmatprep.subr.mxu0 0.0
    %515 = vmatpush2.msra.mxu0 0.0
    %516 = vmatprep.mubr.f32.mxu0 0.0
    %517 = vmatmul.mubr.f32.gmra.mxu0 %v450
    %v518 = vpop.f32.mrf.mxu0
    %v519 = vadd.f32 0.0, %v518
    %v520 = vpop.f32.mrf.mxu0
    %521 = vdwg.mxu0
    %v522 = vadd.f32 %v129, %v519
    %v523 = vtanh.pop %v522
    %v525 = vsel %vm39, %v523, 0
    %527 = vmatprep.subr.mxu0 0.0
    %528 = vmatpush1.msra.mxu0 0.0
    %529 = vmatprep.subr.mxu0 0.0
    %530 = vmatpush1.msra.mxu0 0.0
    %531 = vmatprep.subr.mxu0 0.0
    %532 = vmatpush1.msra.mxu0 0.0
    %533 = vmatprep.subr.mxu0 0.0
    %534 = vmatpush1.msra.mxu0 0.0
    %535 = vmatprep.subr.mxu0 0.0
    %536 = vmatpush1.msra.mxu0 0.0
    %537 = vmatprep.subr.mxu0 0.0
    %538 = vmatpush1.msra.mxu0 0.0
    %539 = vmatprep.subr.mxu0 0.0
    %540 = vmatpush1.msra.mxu0 0.0
    %541 = vmatprep.subr.mxu0 0.0
    %542 = vmatpush1.msra.mxu0 0.0
    %543 = vmatprep.subr.mxu0 0.0
    %544 = vmatpush1.msra.mxu0 0.0
    %545 = vmatprep.subr.mxu0 0.0
    %546 = vmatpush1.msra.mxu0 0.0
    %547 = vmatprep.subr.mxu0 0.0
    %548 = vmatpush1.msra.mxu0 0.0
    %549 = vmatprep.subr.mxu0 0.0
    %550 = vmatpush1.msra.mxu0 0.0
    %551 = vmatprep.subr.mxu0 0.0
    %552 = vmatpush1.msra.mxu0 %v140
    %553 = vmatprep.subr.mxu0 0.0
    %554 = vmatpush1.msra.mxu0 %v139
    %555 = vmatprep.subr.mxu0 0.0
    %556 = vmatpush1.msra.mxu0 %v138
    %557 = vmatprep.subr.mxu0 0.0
    %558 = vmatpush1.msra.mxu0 %v137
    %559 = vmatprep.subr.mxu0 0.0
    %560 = vmatpush2.msra.mxu0 0.0
    %561 = vmatprep.subr.mxu0 0.0
    %562 = vmatpush2.msra.mxu0 0.0
    %563 = vmatprep.subr.mxu0 0.0
    %564 = vmatpush2.msra.mxu0 0.0
    %565 = vmatprep.subr.mxu0 0.0
    %566 = vmatpush2.msra.mxu0 0.0
    %567 = vmatprep.subr.mxu0 0.0
    %568 = vmatpush2.msra.mxu0 0.0
    %569 = vmatprep.subr.mxu0 0.0
    %570 = vmatpush2.msra.mxu0 0.0
    %571 = vmatprep.subr.mxu0 0.0
    %572 = vmatpush2.msra.mxu0 0.0
    %573 = vmatprep.subr.mxu0 0.0
    %574 = vmatpush2.msra.mxu0 0.0
    %575 = vmatprep.subr.mxu0 0.0
    %576 = vmatpush2.msra.mxu0 0.0
    %577 = vmatprep.subr.mxu0 0.0
    %578 = vmatpush2.msra.mxu0 0.0
    %579 = vmatprep.subr.mxu0 0.0
    %580 = vmatpush2.msra.mxu0 0.0
    %581 = vmatprep.subr.mxu0 0.0
    %582 = vmatpush2.msra.mxu0 0.0
    %583 = vmatprep.subr.mxu0 0.0
    %584 = vmatpush2.msra.mxu0 0.0
    %585 = vmatprep.subr.mxu0 0.0
    %586 = vmatpush2.msra.mxu0 0.0
    %587 = vmatprep.subr.mxu0 0.0
    %588 = vmatpush2.msra.mxu0 0.0
    %589 = vmatprep.subr.mxu0 0.0
    %590 = vmatpush2.msra.mxu0 0.0
    %591 = vmatprep.mubr.f32.mxu0 0.0
    %592 = vmatmul.mubr.f32.gmra.mxu0 %v525
    %v593 = vpop.f32.mrf.mxu0
    %v594 = vadd.f32 0.0, %v593
    %v595 = vpop.f32.mrf.mxu0
    %596 = vdwg.mxu0
    %v598 = vrot.slane %v594, 4
    %v600 = vadd.f32 %v129, %v598
    %v601 = vtanh.pop %v600
    %v603 = vrot.slane %v601, 4
    %v604 = vsel %vm39, %v603, 0
    %606 = vmatprep.subr.mxu0 0.0
    %607 = vmatpush1.msra.mxu0 0.0
    %608 = vmatprep.subr.mxu0 0.0
    %609 = vmatpush1.msra.mxu0 0.0
    %610 = vmatprep.subr.mxu0 0.0
    %611 = vmatpush1.msra.mxu0 0.0
    %612 = vmatprep.subr.mxu0 0.0
    %613 = vmatpush1.msra.mxu0 0.0
    %614 = vmatprep.subr.mxu0 0.0
    %615 = vmatpush1.msra.mxu0 0.0
    %616 = vmatprep.subr.mxu0 0.0
    %617 = vmatpush1.msra.mxu0 0.0
    %618 = vmatprep.subr.mxu0 0.0
    %619 = vmatpush1.msra.mxu0 0.0
    %620 = vmatprep.subr.mxu0 0.0
    %621 = vmatpush1.msra.mxu0 0.0
    %622 = vmatprep.subr.mxu0 0.0
    %623 = vmatpush1.msra.mxu0 0.0
    %624 = vmatprep.subr.mxu0 0.0
    %625 = vmatpush1.msra.mxu0 0.0
    %626 = vmatprep.subr.mxu0 0.0
    %627 = vmatpush1.msra.mxu0 0.0
    %628 = vmatprep.subr.mxu0 0.0
    %629 = vmatpush1.msra.mxu0 0.0
    %630 = vmatprep.subr.mxu0 0.0
    %631 = vmatpush1.msra.mxu0 %v140
    %632 = vmatprep.subr.mxu0 0.0
    %633 = vmatpush1.msra.mxu0 %v139
    %634 = vmatprep.subr.mxu0 0.0
    %635 = vmatpush1.msra.mxu0 %v138
    %636 = vmatprep.subr.mxu0 0.0
    %637 = vmatpush1.msra.mxu0 %v137
    %638 = vmatprep.subr.mxu0 0.0
    %639 = vmatpush2.msra.mxu0 0.0
    %640 = vmatprep.subr.mxu0 0.0
    %641 = vmatpush2.msra.mxu0 0.0
    %642 = vmatprep.subr.mxu0 0.0
    %643 = vmatpush2.msra.mxu0 0.0
    %644 = vmatprep.subr.mxu0 0.0
    %645 = vmatpush2.msra.mxu0 0.0
    %646 = vmatprep.subr.mxu0 0.0
    %647 = vmatpush2.msra.mxu0 0.0
    %648 = vmatprep.subr.mxu0 0.0
    %649 = vmatpush2.msra.mxu0 0.0
    %650 = vmatprep.subr.mxu0 0.0
    %651 = vmatpush2.msra.mxu0 0.0
    %652 = vmatprep.subr.mxu0 0.0
    %653 = vmatpush2.msra.mxu0 0.0
    %654 = vmatprep.subr.mxu0 0.0
    %655 = vmatpush2.msra.mxu0 0.0
    %656 = vmatprep.subr.mxu0 0.0
    %657 = vmatpush2.msra.mxu0 0.0
    %658 = vmatprep.subr.mxu0 0.0
    %659 = vmatpush2.msra.mxu0 0.0
    %660 = vmatprep.subr.mxu0 0.0
    %661 = vmatpush2.msra.mxu0 0.0
    %662 = vmatprep.subr.mxu0 0.0
    %663 = vmatpush2.msra.mxu0 0.0
    %664 = vmatprep.subr.mxu0 0.0
    %665 = vmatpush2.msra.mxu0 0.0
    %666 = vmatprep.subr.mxu0 0.0
    %667 = vmatpush2.msra.mxu0 0.0
    %668 = vmatprep.subr.mxu0 0.0
    %669 = vmatpush2.msra.mxu0 0.0
    %670 = vmatprep.mubr.f32.mxu0 0.0
    %671 = vmatmul.mubr.f32.gmra.mxu0 %v604
    %v672 = vpop.f32.mrf.mxu0
    %v673 = vadd.f32 0.0, %v672
    %v674 = vpop.f32.mrf.mxu0
    %675 = vdwg.mxu0
    %v676 = vadd.f32 %v134, %v673
    %v677 = vtanh.pop %v676
    %v679 = vsel %vm39, %v677, 0
    %681 = vmatprep.subr.mxu0 0.0
    %682 = vmatpush1.msra.mxu0 0.0
    %683 = vmatprep.subr.mxu0 0.0
    %684 = vmatpush1.msra.mxu0 0.0
    %685 = vmatprep.subr.mxu0 0.0
    %686 = vmatpush1.msra.mxu0 0.0
    %687 = vmatprep.subr.mxu0 0.0
    %688 = vmatpush1.msra.mxu0 0.0
    %689 = vmatprep.subr.mxu0 0.0
    %690 = vmatpush1.msra.mxu0 0.0
    %691 = vmatprep.subr.mxu0 0.0
    %692 = vmatpush1.msra.mxu0 0.0
    %693 = vmatprep.subr.mxu0 0.0
    %694 = vmatpush1.msra.mxu0 0.0
    %695 = vmatprep.subr.mxu0 0.0
    %696 = vmatpush1.msra.mxu0 0.0
    %697 = vmatprep.subr.mxu0 0.0
    %698 = vmatpush1.msra.mxu0 0.0
    %699 = vmatprep.subr.mxu0 0.0
    %700 = vmatpush1.msra.mxu0 0.0
    %701 = vmatprep.subr.mxu0 0.0
    %702 = vmatpush1.msra.mxu0 0.0
    %703 = vmatprep.subr.mxu0 0.0
    %704 = vmatpush1.msra.mxu0 0.0
    %705 = vmatprep.subr.mxu0 0.0
    %706 = vmatpush1.msra.mxu0 %v140
    %707 = vmatprep.subr.mxu0 0.0
    %708 = vmatpush1.msra.mxu0 %v139
    %709 = vmatprep.subr.mxu0 0.0
    %710 = vmatpush1.msra.mxu0 %v138
    %711 = vmatprep.subr.mxu0 0.0
    %712 = vmatpush1.msra.mxu0 %v137
    %713 = vmatprep.subr.mxu0 0.0
    %714 = vmatpush2.msra.mxu0 0.0
    %715 = vmatprep.subr.mxu0 0.0
    %716 = vmatpush2.msra.mxu0 0.0
    %717 = vmatprep.subr.mxu0 0.0
    %718 = vmatpush2.msra.mxu0 0.0
    %719 = vmatprep.subr.mxu0 0.0
    %720 = vmatpush2.msra.mxu0 0.0
    %721 = vmatprep.subr.mxu0 0.0
    %722 = vmatpush2.msra.mxu0 0.0
    %723 = vmatprep.subr.mxu0 0.0
    %724 = vmatpush2.msra.mxu0 0.0
    %725 = vmatprep.subr.mxu0 0.0
    %726 = vmatpush2.msra.mxu0 0.0
    %727 = vmatprep.subr.mxu0 0.0
    %728 = vmatpush2.msra.mxu0 0.0
    %729 = vmatprep.subr.mxu0 0.0
    %730 = vmatpush2.msra.mxu0 0.0
    %731 = vmatprep.subr.mxu0 0.0
    %732 = vmatpush2.msra.mxu0 0.0
    %733 = vmatprep.subr.mxu0 0.0
    %734 = vmatpush2.msra.mxu0 0.0
    %735 = vmatprep.subr.mxu0 0.0
    %736 = vmatpush2.msra.mxu0 0.0
    %737 = vmatprep.subr.mxu0 0.0
    %738 = vmatpush2.msra.mxu0 0.0
    %739 = vmatprep.subr.mxu0 0.0
    %740 = vmatpush2.msra.mxu0 0.0
    %741 = vmatprep.subr.mxu0 0.0
    %742 = vmatpush2.msra.mxu0 0.0
    %743 = vmatprep.subr.mxu0 0.0
    %744 = vmatpush2.msra.mxu0 0.0
    %745 = vmatprep.mubr.f32.mxu0 0.0
    %746 = vmatmul.mubr.f32.gmra.mxu0 %v679
    %v747 = vpop.f32.mrf.mxu0
    %v748 = vadd.f32 0.0, %v747
    %v749 = vpop.f32.mrf.mxu0
    %750 = vdwg.mxu0
    %v752 = vrot.slane %v748, 4
    %v754 = vadd.f32 %v134, %v752
    %v755 = vtanh.pop %v754
    %vm756 = vcmask 1043456
    %v757 = vsel %vm756, %v215, %v293
    %v758 = vsel %vm756, %v369, %v447
    %v759 = vsel %vm756, %v523, %v601
    %v760 = vsel %vm756, %v677, %v755
    %s761 = scalar_lea.vmem %s1, 32
    %v762 = vld [vmem:[%s761] sm:$0xff]
    %v763 = vld [vmem:[%s761 + $0x8] sm:$0xff]
    %v764 = vld [vmem:[%s761 + $0x10] sm:$0xff]
    %v765 = vld [vmem:[%s761 + $0x18] sm:$0xff]
    %s766 = scalar_lea.vmem %s3, 1
    %v767 = vld [vmem:[%s766] sm:$0x1]
    %v769 = vlaneseq
    %v770 = vshrl.u32 %v769, 7
    %v771 = vsub.s32 0, %v770
    %v772 = vrot.slane %v767, %v771
    %v775 = vsel %vm39, %v757, 0
    %v778 = vsel %vm39, %v758, 0
    %v781 = vsel %vm39, %v759, 0
    %v784 = vsel %vm39, %v760, 0
    %786 = vmatprep.subr.mxu0 0.0
    %787 = vmatpush1.msra.mxu0 0.0
    %788 = vmatprep.subr.mxu0 0.0
    %789 = vmatpush1.msra.mxu0 0.0
    %790 = vmatprep.subr.mxu0 0.0
    %791 = vmatpush1.msra.mxu0 0.0
    %792 = vmatprep.subr.mxu0 0.0
    %793 = vmatpush1.msra.mxu0 0.0
    %794 = vmatprep.subr.mxu0 0.0
    %795 = vmatpush1.msra.mxu0 0.0
    %796 = vmatprep.subr.mxu0 0.0
    %797 = vmatpush1.msra.mxu0 0.0
    %798 = vmatprep.subr.mxu0 0.0
    %799 = vmatpush1.msra.mxu0 0.0
    %800 = vmatprep.subr.mxu0 0.0
    %801 = vmatpush1.msra.mxu0 0.0
    %802 = vmatprep.subr.mxu0 0.0
    %803 = vmatpush1.msra.mxu0 0.0
    %804 = vmatprep.subr.mxu0 0.0
    %805 = vmatpush1.msra.mxu0 0.0
    %806 = vmatprep.subr.mxu0 0.0
    %807 = vmatpush1.msra.mxu0 0.0
    %808 = vmatprep.subr.mxu0 0.0
    %809 = vmatpush1.msra.mxu0 0.0
    %810 = vmatprep.subr.mxu0 0.0
    %811 = vmatpush1.msra.mxu0 %v765
    %812 = vmatprep.subr.mxu0 0.0
    %813 = vmatpush1.msra.mxu0 %v764
    %814 = vmatprep.subr.mxu0 0.0
    %815 = vmatpush1.msra.mxu0 %v763
    %816 = vmatprep.subr.mxu0 0.0
    %817 = vmatpush1.msra.mxu0 %v762
    %818 = vmatprep.subr.mxu0 0.0
    %819 = vmatpush2.msra.mxu0 0.0
    %820 = vmatprep.subr.mxu0 0.0
    %821 = vmatpush2.msra.mxu0 0.0
    %822 = vmatprep.subr.mxu0 0.0
    %823 = vmatpush2.msra.mxu0 0.0
    %824 = vmatprep.subr.mxu0 0.0
    %825 = vmatpush2.msra.mxu0 0.0
    %826 = vmatprep.subr.mxu0 0.0
    %827 = vmatpush2.msra.mxu0 0.0
    %828 = vmatprep.subr.mxu0 0.0
    %829 = vmatpush2.msra.mxu0 0.0
    %830 = vmatprep.subr.mxu0 0.0
    %831 = vmatpush2.msra.mxu0 0.0
    %832 = vmatprep.subr.mxu0 0.0
    %833 = vmatpush2.msra.mxu0 0.0
    %834 = vmatprep.subr.mxu0 0.0
    %835 = vmatpush2.msra.mxu0 0.0
    %836 = vmatprep.subr.mxu0 0.0
    %837 = vmatpush2.msra.mxu0 0.0
    %838 = vmatprep.subr.mxu0 0.0
    %839 = vmatpush2.msra.mxu0 0.0
    %840 = vmatprep.subr.mxu0 0.0
    %841 = vmatpush2.msra.mxu0 0.0
    %842 = vmatprep.subr.mxu0 0.0
    %843 = vmatpush2.msra.mxu0 0.0
    %844 = vmatprep.subr.mxu0 0.0
    %845 = vmatpush2.msra.mxu0 0.0
    %846 = vmatprep.subr.mxu0 0.0
    %847 = vmatpush2.msra.mxu0 0.0
    %848 = vmatprep.subr.mxu0 0.0
    %849 = vmatpush2.msra.mxu0 0.0
    %850 = vmatprep.mubr.f32.mxu0 0.0
    %851 = vmatmul.mubr.f32.gmra.mxu0 %v775
    %v852 = vpop.f32.mrf.mxu0
    %v853 = vadd.f32 %v772, %v852
    %v854 = vpop.f32.mrf.mxu0
    %855 = vmatprep.mubr.f32.mxu0 0.0
    %856 = vmatmul.mubr.f32.gmra.mxu0 %v778
    %v857 = vpop.f32.mrf.mxu0
    %v858 = vadd.f32 %v772, %v857
    %v859 = vpop.f32.mrf.mxu0
    %860 = vmatprep.mubr.f32.mxu0 0.0
    %861 = vmatmul.mubr.f32.gmra.mxu0 %v781
    %v862 = vpop.f32.mrf.mxu0
    %v863 = vadd.f32 %v772, %v862
    %v864 = vpop.f32.mrf.mxu0
    %865 = vmatprep.mubr.f32.mxu0 0.0
    %866 = vmatmul.mubr.f32.gmra.mxu0 %v784
    %v867 = vpop.f32.mrf.mxu0
    %v868 = vadd.f32 %v772, %v867
    %v869 = vpop.f32.mrf.mxu0
    %870 = vdwg.mxu0
    %s871 = scalar_lea.vmem %s2, 32
    %v872 = vld [vmem:[%s871] sm:$0xff]
    %v873 = vld [vmem:[%s871 + $0x8] sm:$0xff]
    %v874 = vld [vmem:[%s871 + $0x10] sm:$0xff]
    %v875 = vld [vmem:[%s871 + $0x18] sm:$0xff]
    %876 = vmatprep.subr.mxu0 0.0
    %877 = vmatpush1.msra.mxu0 0.0
    %878 = vmatprep.subr.mxu0 0.0
    %879 = vmatpush1.msra.mxu0 0.0
    %880 = vmatprep.subr.mxu0 0.0
    %881 = vmatpush1.msra.mxu0 0.0
    %882 = vmatprep.subr.mxu0 0.0
    %883 = vmatpush1.msra.mxu0 0.0
    %884 = vmatprep.subr.mxu0 0.0
    %885 = vmatpush1.msra.mxu0 0.0
    %886 = vmatprep.subr.mxu0 0.0
    %887 = vmatpush1.msra.mxu0 0.0
    %888 = vmatprep.subr.mxu0 0.0
    %889 = vmatpush1.msra.mxu0 0.0
    %890 = vmatprep.subr.mxu0 0.0
    %891 = vmatpush1.msra.mxu0 0.0
    %892 = vmatprep.subr.mxu0 0.0
    %893 = vmatpush1.msra.mxu0 0.0
    %894 = vmatprep.subr.mxu0 0.0
    %895 = vmatpush1.msra.mxu0 0.0
    %896 = vmatprep.subr.mxu0 0.0
    %897 = vmatpush1.msra.mxu0 0.0
    %898 = vmatprep.subr.mxu0 0.0
    %899 = vmatpush1.msra.mxu0 0.0
    %900 = vmatprep.subr.mxu0 0.0
    %901 = vmatpush1.msra.mxu0 %v875
    %902 = vmatprep.subr.mxu0 0.0
    %903 = vmatpush1.msra.mxu0 %v874
    %904 = vmatprep.subr.mxu0 0.0
    %905 = vmatpush1.msra.mxu0 %v873
    %906 = vmatprep.subr.mxu0 0.0
    %907 = vmatpush1.msra.mxu0 %v872
    %908 = vmatprep.subr.mxu0 0.0
    %909 = vmatpush2.msra.mxu0 0.0
    %910 = vmatprep.subr.mxu0 0.0
    %911 = vmatpush2.msra.mxu0 0.0
    %912 = vmatprep.subr.mxu0 0.0
    %913 = vmatpush2.msra.mxu0 0.0
    %914 = vmatprep.subr.mxu0 0.0
    %915 = vmatpush2.msra.mxu0 0.0
    %916 = vmatprep.subr.mxu0 0.0
    %917 = vmatpush2.msra.mxu0 0.0
    %918 = vmatprep.subr.mxu0 0.0
    %919 = vmatpush2.msra.mxu0 0.0
    %920 = vmatprep.subr.mxu0 0.0
    %921 = vmatpush2.msra.mxu0 0.0
    %922 = vmatprep.subr.mxu0 0.0
    %923 = vmatpush2.msra.mxu0 0.0
    %924 = vmatprep.subr.mxu0 0.0
    %925 = vmatpush2.msra.mxu0 0.0
    %926 = vmatprep.subr.mxu0 0.0
    %927 = vmatpush2.msra.mxu0 0.0
    %928 = vmatprep.subr.mxu0 0.0
    %929 = vmatpush2.msra.mxu0 0.0
    %930 = vmatprep.subr.mxu0 0.0
    %931 = vmatpush2.msra.mxu0 0.0
    %932 = vmatprep.subr.mxu0 0.0
    %933 = vmatpush2.msra.mxu0 0.0
    %934 = vmatprep.subr.mxu0 0.0
    %935 = vmatpush2.msra.mxu0 0.0
    %936 = vmatprep.subr.mxu0 0.0
    %937 = vmatpush2.msra.mxu0 0.0
    %938 = vmatprep.subr.mxu0 0.0
    %939 = vmatpush2.msra.mxu0 0.0
    %940 = vmatprep.mubr.f32.mxu0 0.0
    %941 = vmatmul.mubr.f32.gmra.mxu0 %v142
    %v942 = vpop.f32.mrf.mxu0
    %v943 = vadd.f32 0.0, %v942
    %v944 = vpop.f32.mrf.mxu0
    %945 = vdwg.mxu0
    %v946 = vadd.f32 %v853, %v943
    %v947 = vtanh.pop %v946
    %v949 = vsel %vm39, %v947, 0
    %951 = vmatprep.subr.mxu0 0.0
    %952 = vmatpush1.msra.mxu0 0.0
    %953 = vmatprep.subr.mxu0 0.0
    %954 = vmatpush1.msra.mxu0 0.0
    %955 = vmatprep.subr.mxu0 0.0
    %956 = vmatpush1.msra.mxu0 0.0
    %957 = vmatprep.subr.mxu0 0.0
    %958 = vmatpush1.msra.mxu0 0.0
    %959 = vmatprep.subr.mxu0 0.0
    %960 = vmatpush1.msra.mxu0 0.0
    %961 = vmatprep.subr.mxu0 0.0
    %962 = vmatpush1.msra.mxu0 0.0
    %963 = vmatprep.subr.mxu0 0.0
    %964 = vmatpush1.msra.mxu0 0.0
    %965 = vmatprep.subr.mxu0 0.0
    %966 = vmatpush1.msra.mxu0 0.0
    %967 = vmatprep.subr.mxu0 0.0
    %968 = vmatpush1.msra.mxu0 0.0
    %969 = vmatprep.subr.mxu0 0.0
    %970 = vmatpush1.msra.mxu0 0.0
    %971 = vmatprep.subr.mxu0 0.0
    %972 = vmatpush1.msra.mxu0 0.0
    %973 = vmatprep.subr.mxu0 0.0
    %974 = vmatpush1.msra.mxu0 0.0
    %975 = vmatprep.subr.mxu0 0.0
    %976 = vmatpush1.msra.mxu0 %v875
    %977 = vmatprep.subr.mxu0 0.0
    %978 = vmatpush1.msra.mxu0 %v874
    %979 = vmatprep.subr.mxu0 0.0
    %980 = vmatpush1.msra.mxu0 %v873
    %981 = vmatprep.subr.mxu0 0.0
    %982 = vmatpush1.msra.mxu0 %v872
    %983 = vmatprep.subr.mxu0 0.0
    %984 = vmatpush2.msra.mxu0 0.0
    %985 = vmatprep.subr.mxu0 0.0
    %986 = vmatpush2.msra.mxu0 0.0
    %987 = vmatprep.subr.mxu0 0.0
    %988 = vmatpush2.msra.mxu0 0.0
    %989 = vmatprep.subr.mxu0 0.0
    %990 = vmatpush2.msra.mxu0 0.0
    %991 = vmatprep.subr.mxu0 0.0
    %992 = vmatpush2.msra.mxu0 0.0
    %993 = vmatprep.subr.mxu0 0.0
    %994 = vmatpush2.msra.mxu0 0.0
    %995 = vmatprep.subr.mxu0 0.0
    %996 = vmatpush2.msra.mxu0 0.0
    %997 = vmatprep.subr.mxu0 0.0
    %998 = vmatpush2.msra.mxu0 0.0
    %999 = vmatprep.subr.mxu0 0.0
    %1000 = vmatpush2.msra.mxu0 0.0
    %1001 = vmatprep.subr.mxu0 0.0
    %1002 = vmatpush2.msra.mxu0 0.0
    %1003 = vmatprep.subr.mxu0 0.0
    %1004 = vmatpush2.msra.mxu0 0.0
    %1005 = vmatprep.subr.mxu0 0.0
    %1006 = vmatpush2.msra.mxu0 0.0
    %1007 = vmatprep.subr.mxu0 0.0
    %1008 = vmatpush2.msra.mxu0 0.0
    %1009 = vmatprep.subr.mxu0 0.0
    %1010 = vmatpush2.msra.mxu0 0.0
    %1011 = vmatprep.subr.mxu0 0.0
    %1012 = vmatpush2.msra.mxu0 0.0
    %1013 = vmatprep.subr.mxu0 0.0
    %1014 = vmatpush2.msra.mxu0 0.0
    %1015 = vmatprep.mubr.f32.mxu0 0.0
    %1016 = vmatmul.mubr.f32.gmra.mxu0 %v949
    %v1017 = vpop.f32.mrf.mxu0
    %v1018 = vadd.f32 0.0, %v1017
    %v1019 = vpop.f32.mrf.mxu0
    %1020 = vdwg.mxu0
    %v1022 = vrot.slane %v1018, 4
    %v1024 = vadd.f32 %v853, %v1022
    %v1025 = vtanh.pop %v1024
    %v1027 = vrot.slane %v1025, 4
    %v1028 = vsel %vm39, %v1027, 0
    %1030 = vmatprep.subr.mxu0 0.0
    %1031 = vmatpush1.msra.mxu0 0.0
    %1032 = vmatprep.subr.mxu0 0.0
    %1033 = vmatpush1.msra.mxu0 0.0
    %1034 = vmatprep.subr.mxu0 0.0
    %1035 = vmatpush1.msra.mxu0 0.0
    %1036 = vmatprep.subr.mxu0 0.0
    %1037 = vmatpush1.msra.mxu0 0.0
    %1038 = vmatprep.subr.mxu0 0.0
    %1039 = vmatpush1.msra.mxu0 0.0
    %1040 = vmatprep.subr.mxu0 0.0
    %1041 = vmatpush1.msra.mxu0 0.0
    %1042 = vmatprep.subr.mxu0 0.0
    %1043 = vmatpush1.msra.mxu0 0.0
    %1044 = vmatprep.subr.mxu0 0.0
    %1045 = vmatpush1.msra.mxu0 0.0
    %1046 = vmatprep.subr.mxu0 0.0
    %1047 = vmatpush1.msra.mxu0 0.0
    %1048 = vmatprep.subr.mxu0 0.0
    %1049 = vmatpush1.msra.mxu0 0.0
    %1050 = vmatprep.subr.mxu0 0.0
    %1051 = vmatpush1.msra.mxu0 0.0
    %1052 = vmatprep.subr.mxu0 0.0
    %1053 = vmatpush1.msra.mxu0 0.0
    %1054 = vmatprep.subr.mxu0 0.0
    %1055 = vmatpush1.msra.mxu0 %v875
    %1056 = vmatprep.subr.mxu0 0.0
    %1057 = vmatpush1.msra.mxu0 %v874
    %1058 = vmatprep.subr.mxu0 0.0
    %1059 = vmatpush1.msra.mxu0 %v873
    %1060 = vmatprep.subr.mxu0 0.0
    %1061 = vmatpush1.msra.mxu0 %v872
    %1062 = vmatprep.subr.mxu0 0.0
    %1063 = vmatpush2.msra.mxu0 0.0
    %1064 = vmatprep.subr.mxu0 0.0
    %1065 = vmatpush2.msra.mxu0 0.0
    %1066 = vmatprep.subr.mxu0 0.0
    %1067 = vmatpush2.msra.mxu0 0.0
    %1068 = vmatprep.subr.mxu0 0.0
    %1069 = vmatpush2.msra.mxu0 0.0
    %1070 = vmatprep.subr.mxu0 0.0
    %1071 = vmatpush2.msra.mxu0 0.0
    %1072 = vmatprep.subr.mxu0 0.0
    %1073 = vmatpush2.msra.mxu0 0.0
    %1074 = vmatprep.subr.mxu0 0.0
    %1075 = vmatpush2.msra.mxu0 0.0
    %1076 = vmatprep.subr.mxu0 0.0
    %1077 = vmatpush2.msra.mxu0 0.0
    %1078 = vmatprep.subr.mxu0 0.0
    %1079 = vmatpush2.msra.mxu0 0.0
    %1080 = vmatprep.subr.mxu0 0.0
    %1081 = vmatpush2.msra.mxu0 0.0
    %1082 = vmatprep.subr.mxu0 0.0
    %1083 = vmatpush2.msra.mxu0 0.0
    %1084 = vmatprep.subr.mxu0 0.0
    %1085 = vmatpush2.msra.mxu0 0.0
    %1086 = vmatprep.subr.mxu0 0.0
    %1087 = vmatpush2.msra.mxu0 0.0
    %1088 = vmatprep.subr.mxu0 0.0
    %1089 = vmatpush2.msra.mxu0 0.0
    %1090 = vmatprep.subr.mxu0 0.0
    %1091 = vmatpush2.msra.mxu0 0.0
    %1092 = vmatprep.subr.mxu0 0.0
    %1093 = vmatpush2.msra.mxu0 0.0
    %1094 = vmatprep.mubr.f32.mxu0 0.0
    %1095 = vmatmul.mubr.f32.gmra.mxu0 %v1028
    %v1096 = vpop.f32.mrf.mxu0
    %v1097 = vadd.f32 0.0, %v1096
    %v1098 = vpop.f32.mrf.mxu0
    %1099 = vdwg.mxu0
    %v1100 = vadd.f32 %v858, %v1097
    %v1101 = vtanh.pop %v1100
    %v1103 = vsel %vm39, %v1101, 0
    %1105 = vmatprep.subr.mxu0 0.0
    %1106 = vmatpush1.msra.mxu0 0.0
    %1107 = vmatprep.subr.mxu0 0.0
    %1108 = vmatpush1.msra.mxu0 0.0
    %1109 = vmatprep.subr.mxu0 0.0
    %1110 = vmatpush1.msra.mxu0 0.0
    %1111 = vmatprep.subr.mxu0 0.0
    %1112 = vmatpush1.msra.mxu0 0.0
    %1113 = vmatprep.subr.mxu0 0.0
    %1114 = vmatpush1.msra.mxu0 0.0
    %1115 = vmatprep.subr.mxu0 0.0
    %1116 = vmatpush1.msra.mxu0 0.0
    %1117 = vmatprep.subr.mxu0 0.0
    %1118 = vmatpush1.msra.mxu0 0.0
    %1119 = vmatprep.subr.mxu0 0.0
    %1120 = vmatpush1.msra.mxu0 0.0
    %1121 = vmatprep.subr.mxu0 0.0
    %1122 = vmatpush1.msra.mxu0 0.0
    %1123 = vmatprep.subr.mxu0 0.0
    %1124 = vmatpush1.msra.mxu0 0.0
    %1125 = vmatprep.subr.mxu0 0.0
    %1126 = vmatpush1.msra.mxu0 0.0
    %1127 = vmatprep.subr.mxu0 0.0
    %1128 = vmatpush1.msra.mxu0 0.0
    %1129 = vmatprep.subr.mxu0 0.0
    %1130 = vmatpush1.msra.mxu0 %v875
    %1131 = vmatprep.subr.mxu0 0.0
    %1132 = vmatpush1.msra.mxu0 %v874
    %1133 = vmatprep.subr.mxu0 0.0
    %1134 = vmatpush1.msra.mxu0 %v873
    %1135 = vmatprep.subr.mxu0 0.0
    %1136 = vmatpush1.msra.mxu0 %v872
    %1137 = vmatprep.subr.mxu0 0.0
    %1138 = vmatpush2.msra.mxu0 0.0
    %1139 = vmatprep.subr.mxu0 0.0
    %1140 = vmatpush2.msra.mxu0 0.0
    %1141 = vmatprep.subr.mxu0 0.0
    %1142 = vmatpush2.msra.mxu0 0.0
    %1143 = vmatprep.subr.mxu0 0.0
    %1144 = vmatpush2.msra.mxu0 0.0
    %1145 = vmatprep.subr.mxu0 0.0
    %1146 = vmatpush2.msra.mxu0 0.0
    %1147 = vmatprep.subr.mxu0 0.0
    %1148 = vmatpush2.msra.mxu0 0.0
    %1149 = vmatprep.subr.mxu0 0.0
    %1150 = vmatpush2.msra.mxu0 0.0
    %1151 = vmatprep.subr.mxu0 0.0
    %1152 = vmatpush2.msra.mxu0 0.0
    %1153 = vmatprep.subr.mxu0 0.0
    %1154 = vmatpush2.msra.mxu0 0.0
    %1155 = vmatprep.subr.mxu0 0.0
    %1156 = vmatpush2.msra.mxu0 0.0
    %1157 = vmatprep.subr.mxu0 0.0
    %1158 = vmatpush2.msra.mxu0 0.0
    %1159 = vmatprep.subr.mxu0 0.0
    %1160 = vmatpush2.msra.mxu0 0.0
    %1161 = vmatprep.subr.mxu0 0.0
    %1162 = vmatpush2.msra.mxu0 0.0
    %1163 = vmatprep.subr.mxu0 0.0
    %1164 = vmatpush2.msra.mxu0 0.0
    %1165 = vmatprep.subr.mxu0 0.0
    %1166 = vmatpush2.msra.mxu0 0.0
    %1167 = vmatprep.subr.mxu0 0.0
    %1168 = vmatpush2.msra.mxu0 0.0
    %1169 = vmatprep.mubr.f32.mxu0 0.0
    %1170 = vmatmul.mubr.f32.gmra.mxu0 %v1103
    %v1171 = vpop.f32.mrf.mxu0
    %v1172 = vadd.f32 0.0, %v1171
    %v1173 = vpop.f32.mrf.mxu0
    %1174 = vdwg.mxu0
    %v1176 = vrot.slane %v1172, 4
    %v1178 = vadd.f32 %v858, %v1176
    %v1179 = vtanh.pop %v1178
    %v1181 = vrot.slane %v1179, 4
    %v1182 = vsel %vm39, %v1181, 0
    %1184 = vmatprep.subr.mxu0 0.0
    %1185 = vmatpush1.msra.mxu0 0.0
    %1186 = vmatprep.subr.mxu0 0.0
    %1187 = vmatpush1.msra.mxu0 0.0
    %1188 = vmatprep.subr.mxu0 0.0
    %1189 = vmatpush1.msra.mxu0 0.0
    %1190 = vmatprep.subr.mxu0 0.0
    %1191 = vmatpush1.msra.mxu0 0.0
    %1192 = vmatprep.subr.mxu0 0.0
    %1193 = vmatpush1.msra.mxu0 0.0
    %1194 = vmatprep.subr.mxu0 0.0
    %1195 = vmatpush1.msra.mxu0 0.0
    %1196 = vmatprep.subr.mxu0 0.0
    %1197 = vmatpush1.msra.mxu0 0.0
    %1198 = vmatprep.subr.mxu0 0.0
    %1199 = vmatpush1.msra.mxu0 0.0
    %1200 = vmatprep.subr.mxu0 0.0
    %1201 = vmatpush1.msra.mxu0 0.0
    %1202 = vmatprep.subr.mxu0 0.0
    %1203 = vmatpush1.msra.mxu0 0.0
    %1204 = vmatprep.subr.mxu0 0.0
    %1205 = vmatpush1.msra.mxu0 0.0
    %1206 = vmatprep.subr.mxu0 0.0
    %1207 = vmatpush1.msra.mxu0 0.0
    %1208 = vmatprep.subr.mxu0 0.0
    %1209 = vmatpush1.msra.mxu0 %v875
    %1210 = vmatprep.subr.mxu0 0.0
    %1211 = vmatpush1.msra.mxu0 %v874
    %1212 = vmatprep.subr.mxu0 0.0
    %1213 = vmatpush1.msra.mxu0 %v873
    %1214 = vmatprep.subr.mxu0 0.0
    %1215 = vmatpush1.msra.mxu0 %v872
    %1216 = vmatprep.subr.mxu0 0.0
    %1217 = vmatpush2.msra.mxu0 0.0
    %1218 = vmatprep.subr.mxu0 0.0
    %1219 = vmatpush2.msra.mxu0 0.0
    %1220 = vmatprep.subr.mxu0 0.0
    %1221 = vmatpush2.msra.mxu0 0.0
    %1222 = vmatprep.subr.mxu0 0.0
    %1223 = vmatpush2.msra.mxu0 0.0
    %1224 = vmatprep.subr.mxu0 0.0
    %1225 = vmatpush2.msra.mxu0 0.0
    %1226 = vmatprep.subr.mxu0 0.0
    %1227 = vmatpush2.msra.mxu0 0.0
    %1228 = vmatprep.subr.mxu0 0.0
    %1229 = vmatpush2.msra.mxu0 0.0
    %1230 = vmatprep.subr.mxu0 0.0
    %1231 = vmatpush2.msra.mxu0 0.0
    %1232 = vmatprep.subr.mxu0 0.0
    %1233 = vmatpush2.msra.mxu0 0.0
    %1234 = vmatprep.subr.mxu0 0.0
    %1235 = vmatpush2.msra.mxu0 0.0
    %1236 = vmatprep.subr.mxu0 0.0
    %1237 = vmatpush2.msra.mxu0 0.0
    %1238 = vmatprep.subr.mxu0 0.0
    %1239 = vmatpush2.msra.mxu0 0.0
    %1240 = vmatprep.subr.mxu0 0.0
    %1241 = vmatpush2.msra.mxu0 0.0
    %1242 = vmatprep.subr.mxu0 0.0
    %1243 = vmatpush2.msra.mxu0 0.0
    %1244 = vmatprep.subr.mxu0 0.0
    %1245 = vmatpush2.msra.mxu0 0.0
    %1246 = vmatprep.subr.mxu0 0.0
    %1247 = vmatpush2.msra.mxu0 0.0
    %1248 = vmatprep.mubr.f32.mxu0 0.0
    %1249 = vmatmul.mubr.f32.gmra.mxu0 %v1182
    %v1250 = vpop.f32.mrf.mxu0
    %v1251 = vadd.f32 0.0, %v1250
    %v1252 = vpop.f32.mrf.mxu0
    %1253 = vdwg.mxu0
    %v1254 = vadd.f32 %v863, %v1251
    %v1255 = vtanh.pop %v1254
    %v1257 = vsel %vm39, %v1255, 0
    %1259 = vmatprep.subr.mxu0 0.0
    %1260 = vmatpush1.msra.mxu0 0.0
    %1261 = vmatprep.subr.mxu0 0.0
    %1262 = vmatpush1.msra.mxu0 0.0
    %1263 = vmatprep.subr.mxu0 0.0
    %1264 = vmatpush1.msra.mxu0 0.0
    %1265 = vmatprep.subr.mxu0 0.0
    %1266 = vmatpush1.msra.mxu0 0.0
    %1267 = vmatprep.subr.mxu0 0.0
    %1268 = vmatpush1.msra.mxu0 0.0
    %1269 = vmatprep.subr.mxu0 0.0
    %1270 = vmatpush1.msra.mxu0 0.0
    %1271 = vmatprep.subr.mxu0 0.0
    %1272 = vmatpush1.msra.mxu0 0.0
    %1273 = vmatprep.subr.mxu0 0.0
    %1274 = vmatpush1.msra.mxu0 0.0
    %1275 = vmatprep.subr.mxu0 0.0
    %1276 = vmatpush1.msra.mxu0 0.0
    %1277 = vmatprep.subr.mxu0 0.0
    %1278 = vmatpush1.msra.mxu0 0.0
    %1279 = vmatprep.subr.mxu0 0.0
    %1280 = vmatpush1.msra.mxu0 0.0
    %1281 = vmatprep.subr.mxu0 0.0
    %1282 = vmatpush1.msra.mxu0 0.0
    %1283 = vmatprep.subr.mxu0 0.0
    %1284 = vmatpush1.msra.mxu0 %v875
    %1285 = vmatprep.subr.mxu0 0.0
    %1286 = vmatpush1.msra.mxu0 %v874
    %1287 = vmatprep.subr.mxu0 0.0
    %1288 = vmatpush1.msra.mxu0 %v873
    %1289 = vmatprep.subr.mxu0 0.0
    %1290 = vmatpush1.msra.mxu0 %v872
    %1291 = vmatprep.subr.mxu0 0.0
    %1292 = vmatpush2.msra.mxu0 0.0
    %1293 = vmatprep.subr.mxu0 0.0
    %1294 = vmatpush2.msra.mxu0 0.0
    %1295 = vmatprep.subr.mxu0 0.0
    %1296 = vmatpush2.msra.mxu0 0.0
    %1297 = vmatprep.subr.mxu0 0.0
    %1298 = vmatpush2.msra.mxu0 0.0
    %1299 = vmatprep.subr.mxu0 0.0
    %1300 = vmatpush2.msra.mxu0 0.0
    %1301 = vmatprep.subr.mxu0 0.0
    %1302 = vmatpush2.msra.mxu0 0.0
    %1303 = vmatprep.subr.mxu0 0.0
    %1304 = vmatpush2.msra.mxu0 0.0
    %1305 = vmatprep.subr.mxu0 0.0
    %1306 = vmatpush2.msra.mxu0 0.0
    %1307 = vmatprep.subr.mxu0 0.0
    %1308 = vmatpush2.msra.mxu0 0.0
    %1309 = vmatprep.subr.mxu0 0.0
    %1310 = vmatpush2.msra.mxu0 0.0
    %1311 = vmatprep.subr.mxu0 0.0
    %1312 = vmatpush2.msra.mxu0 0.0
    %1313 = vmatprep.subr.mxu0 0.0
    %1314 = vmatpush2.msra.mxu0 0.0
    %1315 = vmatprep.subr.mxu0 0.0
    %1316 = vmatpush2.msra.mxu0 0.0
    %1317 = vmatprep.subr.mxu0 0.0
    %1318 = vmatpush2.msra.mxu0 0.0
    %1319 = vmatprep.subr.mxu0 0.0
    %1320 = vmatpush2.msra.mxu0 0.0
    %1321 = vmatprep.subr.mxu0 0.0
    %1322 = vmatpush2.msra.mxu0 0.0
    %1323 = vmatprep.mubr.f32.mxu0 0.0
    %1324 = vmatmul.mubr.f32.gmra.mxu0 %v1257
    %v1325 = vpop.f32.mrf.mxu0
    %v1326 = vadd.f32 0.0, %v1325
    %v1327 = vpop.f32.mrf.mxu0
    %1328 = vdwg.mxu0
    %v1330 = vrot.slane %v1326, 4
    %v1332 = vadd.f32 %v863, %v1330
    %v1333 = vtanh.pop %v1332
    %v1335 = vrot.slane %v1333, 4
    %v1336 = vsel %vm39, %v1335, 0
    %1338 = vmatprep.subr.mxu0 0.0
    %1339 = vmatpush1.msra.mxu0 0.0
    %1340 = vmatprep.subr.mxu0 0.0
    %1341 = vmatpush1.msra.mxu0 0.0
    %1342 = vmatprep.subr.mxu0 0.0
    %1343 = vmatpush1.msra.mxu0 0.0
    %1344 = vmatprep.subr.mxu0 0.0
    %1345 = vmatpush1.msra.mxu0 0.0
    %1346 = vmatprep.subr.mxu0 0.0
    %1347 = vmatpush1.msra.mxu0 0.0
    %1348 = vmatprep.subr.mxu0 0.0
    %1349 = vmatpush1.msra.mxu0 0.0
    %1350 = vmatprep.subr.mxu0 0.0
    %1351 = vmatpush1.msra.mxu0 0.0
    %1352 = vmatprep.subr.mxu0 0.0
    %1353 = vmatpush1.msra.mxu0 0.0
    %1354 = vmatprep.subr.mxu0 0.0
    %1355 = vmatpush1.msra.mxu0 0.0
    %1356 = vmatprep.subr.mxu0 0.0
    %1357 = vmatpush1.msra.mxu0 0.0
    %1358 = vmatprep.subr.mxu0 0.0
    %1359 = vmatpush1.msra.mxu0 0.0
    %1360 = vmatprep.subr.mxu0 0.0
    %1361 = vmatpush1.msra.mxu0 0.0
    %1362 = vmatprep.subr.mxu0 0.0
    %1363 = vmatpush1.msra.mxu0 %v875
    %1364 = vmatprep.subr.mxu0 0.0
    %1365 = vmatpush1.msra.mxu0 %v874
    %1366 = vmatprep.subr.mxu0 0.0
    %1367 = vmatpush1.msra.mxu0 %v873
    %1368 = vmatprep.subr.mxu0 0.0
    %1369 = vmatpush1.msra.mxu0 %v872
    %1370 = vmatprep.subr.mxu0 0.0
    %1371 = vmatpush2.msra.mxu0 0.0
    %1372 = vmatprep.subr.mxu0 0.0
    %1373 = vmatpush2.msra.mxu0 0.0
    %1374 = vmatprep.subr.mxu0 0.0
    %1375 = vmatpush2.msra.mxu0 0.0
    %1376 = vmatprep.subr.mxu0 0.0
    %1377 = vmatpush2.msra.mxu0 0.0
    %1378 = vmatprep.subr.mxu0 0.0
    %1379 = vmatpush2.msra.mxu0 0.0
    %1380 = vmatprep.subr.mxu0 0.0
    %1381 = vmatpush2.msra.mxu0 0.0
    %1382 = vmatprep.subr.mxu0 0.0
    %1383 = vmatpush2.msra.mxu0 0.0
    %1384 = vmatprep.subr.mxu0 0.0
    %1385 = vmatpush2.msra.mxu0 0.0
    %1386 = vmatprep.subr.mxu0 0.0
    %1387 = vmatpush2.msra.mxu0 0.0
    %1388 = vmatprep.subr.mxu0 0.0
    %1389 = vmatpush2.msra.mxu0 0.0
    %1390 = vmatprep.subr.mxu0 0.0
    %1391 = vmatpush2.msra.mxu0 0.0
    %1392 = vmatprep.subr.mxu0 0.0
    %1393 = vmatpush2.msra.mxu0 0.0
    %1394 = vmatprep.subr.mxu0 0.0
    %1395 = vmatpush2.msra.mxu0 0.0
    %1396 = vmatprep.subr.mxu0 0.0
    %1397 = vmatpush2.msra.mxu0 0.0
    %1398 = vmatprep.subr.mxu0 0.0
    %1399 = vmatpush2.msra.mxu0 0.0
    %1400 = vmatprep.subr.mxu0 0.0
    %1401 = vmatpush2.msra.mxu0 0.0
    %1402 = vmatprep.mubr.f32.mxu0 0.0
    %1403 = vmatmul.mubr.f32.gmra.mxu0 %v1336
    %v1404 = vpop.f32.mrf.mxu0
    %v1405 = vadd.f32 0.0, %v1404
    %v1406 = vpop.f32.mrf.mxu0
    %1407 = vdwg.mxu0
    %v1408 = vadd.f32 %v868, %v1405
    %v1409 = vtanh.pop %v1408
    %v1411 = vsel %vm39, %v1409, 0
    %1413 = vmatprep.subr.mxu0 0.0
    %1414 = vmatpush1.msra.mxu0 0.0
    %1415 = vmatprep.subr.mxu0 0.0
    %1416 = vmatpush1.msra.mxu0 0.0
    %1417 = vmatprep.subr.mxu0 0.0
    %1418 = vmatpush1.msra.mxu0 0.0
    %1419 = vmatprep.subr.mxu0 0.0
    %1420 = vmatpush1.msra.mxu0 0.0
    %1421 = vmatprep.subr.mxu0 0.0
    %1422 = vmatpush1.msra.mxu0 0.0
    %1423 = vmatprep.subr.mxu0 0.0
    %1424 = vmatpush1.msra.mxu0 0.0
    %1425 = vmatprep.subr.mxu0 0.0
    %1426 = vmatpush1.msra.mxu0 0.0
    %1427 = vmatprep.subr.mxu0 0.0
    %1428 = vmatpush1.msra.mxu0 0.0
    %1429 = vmatprep.subr.mxu0 0.0
    %1430 = vmatpush1.msra.mxu0 0.0
    %1431 = vmatprep.subr.mxu0 0.0
    %1432 = vmatpush1.msra.mxu0 0.0
    %1433 = vmatprep.subr.mxu0 0.0
    %1434 = vmatpush1.msra.mxu0 0.0
    %1435 = vmatprep.subr.mxu0 0.0
    %1436 = vmatpush1.msra.mxu0 0.0
    %1437 = vmatprep.subr.mxu0 0.0
    %1438 = vmatpush1.msra.mxu0 %v875
    %1439 = vmatprep.subr.mxu0 0.0
    %1440 = vmatpush1.msra.mxu0 %v874
    %1441 = vmatprep.subr.mxu0 0.0
    %1442 = vmatpush1.msra.mxu0 %v873
    %1443 = vmatprep.subr.mxu0 0.0
    %1444 = vmatpush1.msra.mxu0 %v872
    %1445 = vmatprep.subr.mxu0 0.0
    %1446 = vmatpush2.msra.mxu0 0.0
    %1447 = vmatprep.subr.mxu0 0.0
    %1448 = vmatpush2.msra.mxu0 0.0
    %1449 = vmatprep.subr.mxu0 0.0
    %1450 = vmatpush2.msra.mxu0 0.0
    %1451 = vmatprep.subr.mxu0 0.0
    %1452 = vmatpush2.msra.mxu0 0.0
    %1453 = vmatprep.subr.mxu0 0.0
    %1454 = vmatpush2.msra.mxu0 0.0
    %1455 = vmatprep.subr.mxu0 0.0
    %1456 = vmatpush2.msra.mxu0 0.0
    %1457 = vmatprep.subr.mxu0 0.0
    %1458 = vmatpush2.msra.mxu0 0.0
    %1459 = vmatprep.subr.mxu0 0.0
    %1460 = vmatpush2.msra.mxu0 0.0
    %1461 = vmatprep.subr.mxu0 0.0
    %1462 = vmatpush2.msra.mxu0 0.0
    %1463 = vmatprep.subr.mxu0 0.0
    %1464 = vmatpush2.msra.mxu0 0.0
    %1465 = vmatprep.subr.mxu0 0.0
    %1466 = vmatpush2.msra.mxu0 0.0
    %1467 = vmatprep.subr.mxu0 0.0
    %1468 = vmatpush2.msra.mxu0 0.0
    %1469 = vmatprep.subr.mxu0 0.0
    %1470 = vmatpush2.msra.mxu0 0.0
    %1471 = vmatprep.subr.mxu0 0.0
    %1472 = vmatpush2.msra.mxu0 0.0
    %1473 = vmatprep.subr.mxu0 0.0
    %1474 = vmatpush2.msra.mxu0 0.0
    %1475 = vmatprep.subr.mxu0 0.0
    %1476 = vmatpush2.msra.mxu0 0.0
    %1477 = vmatprep.mubr.f32.mxu0 0.0
    %1478 = vmatmul.mubr.f32.gmra.mxu0 %v1411
    %v1479 = vpop.f32.mrf.mxu0
    %v1480 = vadd.f32 0.0, %v1479
    %v1481 = vpop.f32.mrf.mxu0
    %1482 = vdwg.mxu0
    %v1484 = vrot.slane %v1480, 4
    %v1486 = vadd.f32 %v868, %v1484
    %v1487 = vtanh.pop %v1486
    %v1488 = vsel %vm756, %v947, %v1025
    %v1489 = vsel %vm756, %v1101, %v1179
    %v1490 = vsel %vm756, %v1255, %v1333
    %v1491 = vsel %vm756, %v1409, %v1487
    %v1492 = vld [vmem:[%s4] sm:$0xff]
    %v1493 = vld [vmem:[%s4 + $0x8] sm:$0xff]
    %v1494 = vld [vmem:[%s4 + $0x10] sm:$0xff]
    %v1495 = vld [vmem:[%s4 + $0x18] sm:$0xff]
    %v1496 = vld [vmem:[%s5] sm:$0x1]
    %v1498 = vlaneseq
    %v1499 = vshrl.u32 %v1498, 7
    %v1500 = vsub.s32 0, %v1499
    %v1501 = vrot.slane %v1496, %v1500
    %v1504 = vsel %vm39, %v1488, 0
    %v1507 = vsel %vm39, %v1489, 0
    %v1510 = vsel %vm39, %v1490, 0
    %v1513 = vsel %vm39, %v1491, 0
    %1515 = vmatprep.subr.mxu0 0.0
    %1516 = vmatpush1.msra.mxu0 0.0
    %1517 = vmatprep.subr.mxu0 0.0
    %1518 = vmatpush1.msra.mxu0 0.0
    %1519 = vmatprep.subr.mxu0 0.0
    %1520 = vmatpush1.msra.mxu0 0.0
    %1521 = vmatprep.subr.mxu0 0.0
    %1522 = vmatpush1.msra.mxu0 0.0
    %1523 = vmatprep.subr.mxu0 0.0
    %1524 = vmatpush1.msra.mxu0 0.0
    %1525 = vmatprep.subr.mxu0 0.0
    %1526 = vmatpush1.msra.mxu0 0.0
    %1527 = vmatprep.subr.mxu0 0.0
    %1528 = vmatpush1.msra.mxu0 0.0
    %1529 = vmatprep.subr.mxu0 0.0
    %1530 = vmatpush1.msra.mxu0 0.0
    %1531 = vmatprep.subr.mxu0 0.0
    %1532 = vmatpush1.msra.mxu0 0.0
    %1533 = vmatprep.subr.mxu0 0.0
    %1534 = vmatpush1.msra.mxu0 0.0
    %1535 = vmatprep.subr.mxu0 0.0
    %1536 = vmatpush1.msra.mxu0 0.0
    %1537 = vmatprep.subr.mxu0 0.0
    %1538 = vmatpush1.msra.mxu0 0.0
    %1539 = vmatprep.subr.mxu0 0.0
    %1540 = vmatpush1.msra.mxu0 %v1495
    %1541 = vmatprep.subr.mxu0 0.0
    %1542 = vmatpush1.msra.mxu0 %v1494
    %1543 = vmatprep.subr.mxu0 0.0
    %1544 = vmatpush1.msra.mxu0 %v1493
    %1545 = vmatprep.subr.mxu0 0.0
    %1546 = vmatpush1.msra.mxu0 %v1492
    %1547 = vmatprep.subr.mxu0 0.0
    %1548 = vmatpush2.msra.mxu0 0.0
    %1549 = vmatprep.subr.mxu0 0.0
    %1550 = vmatpush2.msra.mxu0 0.0
    %1551 = vmatprep.subr.mxu0 0.0
    %1552 = vmatpush2.msra.mxu0 0.0
    %1553 = vmatprep.subr.mxu0 0.0
    %1554 = vmatpush2.msra.mxu0 0.0
    %1555 = vmatprep.subr.mxu0 0.0
    %1556 = vmatpush2.msra.mxu0 0.0
    %1557 = vmatprep.subr.mxu0 0.0
    %1558 = vmatpush2.msra.mxu0 0.0
    %1559 = vmatprep.subr.mxu0 0.0
    %1560 = vmatpush2.msra.mxu0 0.0
    %1561 = vmatprep.subr.mxu0 0.0
    %1562 = vmatpush2.msra.mxu0 0.0
    %1563 = vmatprep.subr.mxu0 0.0
    %1564 = vmatpush2.msra.mxu0 0.0
    %1565 = vmatprep.subr.mxu0 0.0
    %1566 = vmatpush2.msra.mxu0 0.0
    %1567 = vmatprep.subr.mxu0 0.0
    %1568 = vmatpush2.msra.mxu0 0.0
    %1569 = vmatprep.subr.mxu0 0.0
    %1570 = vmatpush2.msra.mxu0 0.0
    %1571 = vmatprep.subr.mxu0 0.0
    %1572 = vmatpush2.msra.mxu0 0.0
    %1573 = vmatprep.subr.mxu0 0.0
    %1574 = vmatpush2.msra.mxu0 0.0
    %1575 = vmatprep.subr.mxu0 0.0
    %1576 = vmatpush2.msra.mxu0 0.0
    %1577 = vmatprep.subr.mxu0 0.0
    %1578 = vmatpush2.msra.mxu0 0.0
    %1579 = vmatprep.mubr.f32.mxu0 0.0
    %1580 = vmatmul.mubr.f32.gmra.mxu0 %v1504
    %v1581 = vpop.f32.mrf.mxu0
    %v1582 = vadd.f32 %v1501, %v1581
    %v1583 = vpop.f32.mrf.mxu0
    %1584 = vmatprep.mubr.f32.mxu0 0.0
    %1585 = vmatmul.mubr.f32.gmra.mxu0 %v1507
    %v1586 = vpop.f32.mrf.mxu0
    %v1587 = vadd.f32 %v1501, %v1586
    %v1588 = vpop.f32.mrf.mxu0
    %1589 = vmatprep.mubr.f32.mxu0 0.0
    %1590 = vmatmul.mubr.f32.gmra.mxu0 %v1510
    %v1591 = vpop.f32.mrf.mxu0
    %v1592 = vadd.f32 %v1501, %v1591
    %v1593 = vpop.f32.mrf.mxu0
    %1594 = vmatprep.mubr.f32.mxu0 0.0
    %1595 = vmatmul.mubr.f32.gmra.mxu0 %v1513
    %v1596 = vpop.f32.mrf.mxu0
    %v1597 = vadd.f32 %v1501, %v1596
    %v1598 = vpop.f32.mrf.mxu0
    %1599 = vdwg.mxu0
    %1600 = vst [vmem:[#allocation2] sm:$0xff] %v1582
    %1601 = vst [vmem:[#allocation2 + $0x8] sm:$0xff] %v1587
    %1602 = vst [vmem:[#allocation2 + $0x10] sm:$0xff] %v1592
    %1603 = vst [vmem:[#allocation2 + $0x18] sm:$0xff] %v1597
    // Predicated region
    $region26: #{decoder_forward.1} parent=1 // pred_check
      _
    $region27: #{decoder_forward.1} parent=1 // pred_check_branch
      %1605 = sbr.rel (0) target = $region29
    $region28: #{decoder_forward.1} parent=1 // pred_region
      %s1607 = ssub.s32 512, 512
      %1608 = vsyncadd [#allocation3], %s1607
      %s1609 = sshll.u32 [#allocation2], 4
      %s1610 = int_to_ptr.vmem [resolvable:$true] %s1609
      %1615 = dma.vmem_to_hbm [thread:$0]  %s1610, 512, %s6, [#allocation3], 128, 128, 8
    $region29: #{decoder_forward.1} parent=1 // pred_fallthru
      _
    // Predicated region
    $region30: #{decoder_forward.1} parent=1 // pred_check
      _
    $region31: #{decoder_forward.1} parent=1 // pred_check_branch
      %1617 = sbr.rel (0) target = $region33
    $region32: #{decoder_forward.1} parent=1 // pred_region
      %1618 = dma.done [#allocation3], 512
    $region33: #{decoder_forward.1} parent=1 // pred_fallthru
      _
    %1619 = vsyncpa [#allocation3], 1

</llo_original>
